<compile_context>
chip_gen: v5e
topology: v5e:2x2
jax: 0.10.0
libtpu: 0.0.40
codegen_flags: <defaults>
</compile_context>

<pallas_src>
import functools

import jax
import jax.numpy as jnp
from jax.experimental import pallas as pl
from jax.experimental.pallas import tpu as pltpu


def _round_up(v, m):
    return (v + m - 1) // m * m


# ----------------------------------------------------------------------------
# Pallas kernel: one TILE_H-row strip of a 3x3 "same" conv + bias.
# ----------------------------------------------------------------------------
def _seqconv3x3_kernel(mid_ref, top_ref, bot_ref, w_ref, b_ref, out_ref,
                       *, W, Co, P3):
    # mid_ref : (1, TH*W, Ci)  pixels of rows [i*TH, (i+1)*TH)   (pixel-major)
    # top_ref : (1, W,    Ci)  pixels of row  i*TH - 1  (clamped; masked if i==0)
    # bot_ref : (1, W,    Ci)  pixels of row  (i+1)*TH  (clamped; masked if last)
    # w_ref   : (Ci, 3*P3)     fused weights: col kh*P3 + kw*Co + co
    # b_ref   : (1, W*Co)      f32 bias pre-tiled across W (lane-dense)
    # out_ref : (1, TH, W*Co)  lane-dense output strip
    _, THW, _Ci = mid_ref.shape
    TH = THW // W
    WCo = W * Co
    f32 = jnp.float32

    i = pl.program_id(1)
    last = pl.num_programs(1) - 1

    wmat = w_ref[...]                                              # (Ci, 3*P3)

    # One MXU call: all 9 taps fused into the N dimension.
    z = jnp.dot(mid_ref[0], wmat, preferred_element_type=f32)      # (TH*W, 3*P3)
    Z = z.reshape(TH, W, 3 * P3)

    # Halo rows: only the kh=0 (row above) / kh=2 (row below) weight blocks are
    # needed -> two tiny dots.  Rows outside the image are zero-masked
    # (implicit zero padding of the folded conv).
    zt = jnp.dot(top_ref[0], wmat[:, 0:P3], preferred_element_type=f32)        # (W, P3)
    zb = jnp.dot(bot_ref[0], wmat[:, 2 * P3:3 * P3], preferred_element_type=f32)
    zt = jnp.where(i > 0, zt, jnp.zeros_like(zt))
    zb = jnp.where(i < last, zb, jnp.zeros_like(zb))

    # kh (row) shifts applied to the matmul outputs; the halo contributions slot
    # in as the missing first / last source rows.  All slices are 128-aligned on
    # the lane axis (each kh block is P3 wide).
    acc = Z[:, :, P3:2 * P3]                                        # kh = 1
    acc = acc + jnp.concatenate([zt[None], Z[:TH - 1, :, 0:P3]], axis=0)          # kh = 0
    acc = acc + jnp.concatenate([Z[1:, :, 2 * P3:3 * P3], zb[None]], axis=0)      # kh = 2
    # acc[r, w, kw*Co + o] = sum_{kh,ci} x[r+kh-1, w, ci] * w[kh, kw, ci, o]

    # kw (column) shifts, bias add and store, all lane-dense on (TH, W*Co).
    # The inserted zero lane-blocks realize the left/right zero padding.
    d0 = acc[:, :, 0:Co].reshape(TH, WCo)        # kw = 0 (needs left neighbor)
    d1 = acc[:, :, Co:2 * Co].reshape(TH, WCo)   # kw = 1
    d2 = acc[:, :, 2 * Co:3 * Co].reshape(TH, WCo)  # kw = 2 (right neighbor)
    zpad = jnp.zeros((TH, Co), f32)
    y = d1
    y = y + jnp.concatenate([zpad, d0[:, :WCo - Co]], axis=1)   # shift right by Co lanes
    y = y + jnp.concatenate([d2[:, Co:], zpad], axis=1)         # shift left by Co lanes
    y = y + b_ref[...]                                          # (1, W*Co) broadcast
    out_ref[0] = y.astype(out_ref.dtype)


# ----------------------------------------------------------------------------
# VMEM budgeting with (8, 128) layout padding accounted for (feedback item).
# ----------------------------------------------------------------------------
def _strip_vmem_bytes(TH, W, Ci, Co, P3, act_bytes, out_bytes):
    pad8 = lambda r: _round_up(max(r, 1), 8)
    pad128 = lambda c: _round_up(max(c, 1), 128)
    WCo = W * Co
    b = 0
    # double-buffered input / output blocks (channel axis lane-padded to 128)
    b += 2 * pad8(TH * W) * pad128(Ci) * act_bytes            # mid strip
    b += 2 * 2 * pad8(W) * pad128(Ci) * act_bytes             # top + bottom halos
    b += 2 * pad8(Ci) * (3 * P3) * act_bytes                  # fused weights (tiny)
    b += 2 * pad8(1) * pad128(WCo) * 4                        # bias row
    b += 2 * pad8(TH) * pad128(WCo) * out_bytes               # output strip
    # in-kernel f32 intermediates: z, kh-shift temps / acc, lane-dense tail
    b += pad8(TH * W) * (3 * P3) * 4
    b += 3 * pad8(TH * W) * P3 * 4
    b += 6 * pad8(TH) * pad128(WCo) * 4
    return b


def _pick_tile_h(H, W, Ci, Co, P3, act_bytes, out_bytes,
                 budget_bytes=20 * 1024 * 1024):
    cands = sorted({th for th in range(8, H + 1, 8) if H % th == 0} | {H})
    fitting = [th for th in cands
               if _strip_vmem_bytes(th, W, Ci, Co, P3, act_bytes, out_bytes)
               <= budget_bytes]
    if not fitting:
        fitting = [cands[0]]
    # Prefer enough row strips per image for pipelining and v7x 2-TC sharding.
    for min_steps in (8, 4, 2):
        good = [th for th in fitting if H // th >= min_steps]
        if good:
            return max(good)
    return max(fitting)


# ----------------------------------------------------------------------------
# NHWC wrapper around pallas_call (use this layout end-to-end in a real model).
# ----------------------------------------------------------------------------
def seqconv3x3_pallas_nhwc(x_nhwc, rep_w_oihw, rep_b, *, tile_h=None,
                           compute_dtype=jnp.float32, out_dtype=None,
                           vmem_budget_bytes=20 * 1024 * 1024):
    N, H, W, Ci = x_nhwc.shape
    Co = rep_w_oihw.shape[0]
    act_dt = jnp.dtype(compute_dtype)
    out_dt = jnp.dtype(out_dtype) if out_dtype is not None else jnp.dtype(jnp.float32)

    if W % 8 != 0:
        # TODO(synk): support W % 8 != 0 by padding W in the wrapper.
        raise ValueError(f"W={W} must be a multiple of 8")

    P3 = _round_up(3 * Co, 128)

    # OIHW -> per-kh fused weight blocks (kw, co contiguous), each lane-padded
    # to P3 so kh-block slices in the kernel are 128-aligned (free).
    wt = jnp.transpose(rep_w_oihw, (1, 2, 3, 0))               # (Ci, kh, kw, Co)
    blocks = [jnp.pad(wt[:, kh].reshape(Ci, 3 * Co),
                      ((0, 0), (0, P3 - 3 * Co))) for kh in range(3)]
    w_main = jnp.concatenate(blocks, axis=1).astype(act_dt)    # (Ci, 3*P3)

    # Bias pre-tiled across W -> full-lane-width add in the kernel.
    brow = jnp.tile(rep_b.astype(jnp.float32), W).reshape(1, W * Co)

    TH = tile_h if tile_h is not None else _pick_tile_h(
        H, W, Ci, Co, P3, act_dt.itemsize, out_dt.itemsize, vmem_budget_bytes)
    if H % TH != 0 or not (TH % 8 == 0 or TH == H):
        raise ValueError(f"tile_h={TH} must divide H={H} and be a multiple of 8"
                         " (or equal H)")
    nH = H // TH
    grid = (N, nH)

    x_flat = x_nhwc.astype(act_dt).reshape(N, H * W, Ci)       # pixel-major

    mid_spec = pl.BlockSpec((1, TH * W, Ci), lambda n, i: (n, i, 0))
    top_spec = pl.BlockSpec(
        (1, W, Ci), lambda n, i: (n, jnp.maximum(i * TH - 1, 0), 0))
    bot_spec = pl.BlockSpec(
        (1, W, Ci), lambda n, i: (n, jnp.minimum((i + 1) * TH, H - 1), 0))
    w_spec = pl.BlockSpec((Ci, 3 * P3), lambda n, i: (0, 0))
    b_spec = pl.BlockSpec((1, W * Co), lambda n, i: (0, 0))
    out_spec = pl.BlockSpec((1, TH, W * Co), lambda n, i: (n, i, 0))

    flops = 2 * N * H * W * 9 * Ci * Co
    bytes_accessed = (N * (H + 2 * nH) * W * Ci * act_dt.itemsize
                      + Ci * 3 * P3 * act_dt.itemsize
                      + N * H * W * Co * out_dt.itemsize)
    cost = pl.CostEstimate(flops=flops, transcendentals=0,
                           bytes_accessed=int(bytes_accessed))

    out_flat = pl.pallas_call(
        functools.partial(_seqconv3x3_kernel, W=W, Co=Co, P3=P3),
        out_shape=jax.ShapeDtypeStruct((N, H, W * Co), out_dt),
        grid=grid,
        in_specs=[mid_spec, top_spec, bot_spec, w_spec, b_spec],
        out_specs=out_spec,
        compiler_params=pltpu.CompilerParams(
            dimension_semantics=("parallel", "parallel"),
            # <= 48 MiB: safe on v7x (64 MiB physical); plenty on v5e/v6e.
            vmem_limit_bytes=48 * 1024 * 1024),
        cost_estimate=cost,
    )(x_flat, x_flat, x_flat, w_main, brow)

    return out_flat.reshape(N, H, W, Co)


# ----------------------------------------------------------------------------
# NCHW adapter matching the PyTorch module interface.
# ----------------------------------------------------------------------------
@functools.partial(jax.jit,
                   static_argnames=("tile_h", "compute_dtype", "out_dtype"))
def seqconv3x3_forward(x_nchw, rep_w_oihw, rep_b, *, tile_h=None,
                       compute_dtype=jnp.float32, out_dtype=None):
    # TODO(synk): in a full ECBSR network keep activations NHWC end-to-end so
    # these two layout transposes (one HBM pass each) disappear.
    x_nhwc = jnp.transpose(x_nchw, (0, 2, 3, 1))
    y_nhwc = seqconv3x3_pallas_nhwc(x_nhwc, rep_w_oihw, rep_b, tile_h=tile_h,
                                    compute_dtype=compute_dtype,
                                    out_dtype=out_dtype)
    return jnp.transpose(y_nhwc, (0, 3, 1, 2))


# ----------------------------------------------------------------------------
# Parameter construction + re-parameterization (plain JAX, mirrors rep_params).
# ----------------------------------------------------------------------------
_MASKS = {
    'conv1x1-sobelx': jnp.array([[1., 0., -1.], [2., 0., -2.], [1., 0., -1.]],
                                jnp.float32),
    'conv1x1-sobely': jnp.array([[1., 2., 1.], [0., 0., 0.], [-1., -2., -1.]],
                                jnp.float32),
    'conv1x1-laplacian': jnp.array([[0., 1., 0.], [1., -4., 1.], [0., 1., 0.]],
                                   jnp.float32),
}


def make_seqconv_params(key, seq_type, in_channels, out_channels,
                        depth_multiplier=1):
    Ci, Co = in_channels, out_channels
    ks = jax.random.split(key, 4)

    def rnd(k, shape, s=0.1):
        return jax.random.normal(k, shape, dtype=jnp.float32) * s

    if seq_type == 'conv1x1-conv3x3':
        mid = int(Co * depth_multiplier)
        return dict(k0=rnd(ks[0], (mid, Ci, 1, 1)), b0=rnd(ks[1], (mid,)),
                    k1=rnd(ks[2], (Co, mid, 3, 3)), b1=rnd(ks[3], (Co,)))
    mask = jnp.broadcast_to(_MASKS[seq_type][None, None], (Co, 1, 3, 3))
    return dict(k0=rnd(ks[0], (Co, Ci, 1, 1)), b0=rnd(ks[1], (Co,)),
                scale=rnd(ks[2], (Co, 1, 1, 1), s=0.001),
                bias=rnd(ks[3], (Co,), s=0.001), mask=mask)


def rep_params(seq_type, p):
    if seq_type == 'conv1x1-conv3x3':
        rep_w = jnp.einsum('omhw,mi->oihw', p['k1'], p['k0'][:, :, 0, 0])
        rep_b = jnp.einsum('m,omhw->o', p['b0'], p['k1']) + p['b1']
    else:
        tmp = p['scale'] * p['mask']                               # (Co,1,3,3)
        rep_w = jnp.einsum('ohw,oi->oihw', tmp[:, 0], p['k0'][:, :, 0, 0])
        rep_b = p['b0'] * tmp[:, 0].sum(axis=(1, 2)) + p['bias']
    return rep_w, rep_b


# ----------------------------------------------------------------------------
# Literal two-stage reference (conv1x1 -> b0-border pad -> conv3x3) matching
# the PyTorch forward() line by line, for correctness validation.
# ----------------------------------------------------------------------------
def seqconv3x3_forward_ref(x_nchw, seq_type, p):
    def conv(inp, w, groups=1):
        return jax.lax.conv_general_dilated(
            inp, w, window_strides=(1, 1), padding='VALID',
            dimension_numbers=('NCHW', 'OIHW', 'NCHW'),
            feature_group_count=groups)

    y0 = conv(x_nchw, p['k0']) + p['b0'][None, :, None, None]
    y0 = jnp.pad(y0, ((0, 0), (0, 0), (1, 1), (1, 1)))
    b0p = p['b0'][None, :, None, None]
    y0 = y0.at[:, :, :1, :].set(b0p)
    y0 = y0.at[:, :, -1:, :].set(b0p)
    y0 = y0.at[:, :, :, :1].set(b0p)
    y0 = y0.at[:, :, :, -1:].set(b0p)
    if seq_type == 'conv1x1-conv3x3':
        return conv(y0, p['k1']) + p['b1'][None, :, None, None]
    w = p['scale'] * p['mask']
    return conv(y0, w, groups=w.shape[0]) + p['bias'][None, :, None, None]


if __name__ == "__main__":
    N, Ci, Co, H, W = 2, 4, 4, 16, 16
    depth_multiplier = 2

    key = jax.random.PRNGKey(0)
    kx, kp = jax.random.split(key)
    x = jax.random.normal(kx, (N, Ci, H, W), dtype=jnp.float32)

    # tile_h=8 -> two row strips per image: exercises the halo path.  Both seq
    # types share one compiled kernel (identical shapes/dtypes).
    for seq_type in ("conv1x1-conv3x3", "conv1x1-sobelx"):
        p = make_seqconv_params(kp, seq_type, Ci, Co, depth_multiplier)
        rep_w, rep_b = rep_params(seq_type, p)
        y_ref = seqconv3x3_forward_ref(x, seq_type, p)
        y = jax.block_until_ready(seqconv3x3_forward(x, rep_w, rep_b, tile_h=8))
        assert y.shape == (N, Co, H, W)
        err = float(jnp.max(jnp.abs(y - y_ref)))
        assert jnp.allclose(y, y_ref, atol=5e-4, rtol=5e-4), (seq_type, err)

    print("KERNEL_OK")
</pallas_src>

<mosaic_0001>
module attributes {stable_mosaic.version = 11 : i64} {
  func.func @_seqconv3x3_kernel(%arg0: i32, %arg1: i32, %arg2: memref<1x128x4xf32, #tpu.memory_space<vmem>>, %arg3: memref<1x16x4xf32, #tpu.memory_space<vmem>>, %arg4: memref<1x16x4xf32, #tpu.memory_space<vmem>>, %arg5: memref<4x384xf32, #tpu.memory_space<vmem>>, %arg6: memref<1x64xf32, #tpu.memory_space<vmem>>, %arg7: memref<1x8x64xf32, #tpu.memory_space<vmem>>) attributes {dimension_semantics = [#tpu.dimension_semantics<parallel>, #tpu.dimension_semantics<parallel>], iteration_bounds = array<i64: 2, 2>, scalar_prefetch = 0 : i64, scratch_operands = 0 : i64, tpu.core_type = #tpu.core_type<tc>, window_params = [{transform_indices = @transform_0, window_bounds = array<i64: 1, 128, 4>}, {transform_indices = @transform_1, window_bounds = array<i64: 1, 16, 4>}, {transform_indices = @transform_2, window_bounds = array<i64: 1, 16, 4>}, {pipeline_mode = #tpu.pipeline_mode<synchronous>, transform_indices = @transform_3, window_bounds = array<i64: 4, 384>}, {pipeline_mode = #tpu.pipeline_mode<synchronous>, transform_indices = @transform_4, window_bounds = array<i64: 1, 64>}, {transform_indices = @transform_5, window_bounds = array<i64: 1, 8, 64>}]} {
    %c0 = arith.constant 0 : index
    %c0_0 = arith.constant 0 : index
    %0 = vector.load %arg5[%c0, %c0_0] : memref<4x384xf32, #tpu.memory_space<vmem>>, vector<4x384xf32>
    %c0_1 = arith.constant 0 : index
    %c0_2 = arith.constant 0 : index
    %c0_3 = arith.constant 0 : index
    %1 = vector.load %arg2[%c0_1, %c0_2, %c0_3] : memref<1x128x4xf32, #tpu.memory_space<vmem>>, vector<1x128x4xf32>
    %2 = vector.shape_cast %1 : vector<1x128x4xf32> to vector<128x4xf32>
    %cst = arith.constant dense<0.000000e+00> : vector<128x384xf32>
    %3 = tpu.matmul %2, %0, %cst {dimension_numbers = #tpu.dot_dimension_numbers<[1], [0], [0], [1], [0, 0, 1, 1], [], []>} : vector<128x4xf32>, vector<4x384xf32>, vector<128x384xf32> -> vector<128x384xf32>
    %4 = vector.shape_cast %3 : vector<128x384xf32> to vector<8x16x384xf32>
    %c0_4 = arith.constant 0 : index
    %c0_5 = arith.constant 0 : index
    %c0_6 = arith.constant 0 : index
    %5 = vector.load %arg3[%c0_4, %c0_5, %c0_6] : memref<1x16x4xf32, #tpu.memory_space<vmem>>, vector<1x16x4xf32>
    %6 = vector.shape_cast %5 : vector<1x16x4xf32> to vector<16x4xf32>
    %7 = vector.extract_strided_slice %0 {offsets = [0, 0], sizes = [4, 128], strides = [1, 1]} : vector<4x384xf32> to vector<4x128xf32>
    %cst_7 = arith.constant dense<0.000000e+00> : vector<16x128xf32>
    %8 = tpu.matmul %6, %7, %cst_7 {dimension_numbers = #tpu.dot_dimension_numbers<[1], [0], [0], [1], [0, 0, 1, 1], [], []>} : vector<16x4xf32>, vector<4x128xf32>, vector<16x128xf32> -> vector<16x128xf32>
    %c0_8 = arith.constant 0 : index
    %c0_9 = arith.constant 0 : index
    %c0_10 = arith.constant 0 : index
    %9 = vector.load %arg4[%c0_8, %c0_9, %c0_10] : memref<1x16x4xf32, #tpu.memory_space<vmem>>, vector<1x16x4xf32>
    %10 = vector.shape_cast %9 : vector<1x16x4xf32> to vector<16x4xf32>
    %11 = vector.extract_strided_slice %0 {offsets = [0, 256], sizes = [4, 128], strides = [1, 1]} : vector<4x384xf32> to vector<4x128xf32>
    %cst_11 = arith.constant dense<0.000000e+00> : vector<16x128xf32>
    %12 = tpu.matmul %10, %11, %cst_11 {dimension_numbers = #tpu.dot_dimension_numbers<[1], [0], [0], [1], [0, 0, 1, 1], [], []>} : vector<16x4xf32>, vector<4x128xf32>, vector<16x128xf32> -> vector<16x128xf32>
    %c0_i32 = arith.constant 0 : i32
    %13 = arith.cmpi sgt, %arg1, %c0_i32 : i32
    %cst_12 = arith.constant 0.000000e+00 : f32
    %14 = vector.broadcast %cst_12 : f32 to vector<16x128xf32>
    %15 = arith.select %13, %8, %14 : vector<16x128xf32>
    %c1_i32 = arith.constant 1 : i32
    %16 = arith.cmpi slt, %arg1, %c1_i32 : i32
    %cst_13 = arith.constant 0.000000e+00 : f32
    %17 = vector.broadcast %cst_13 : f32 to vector<16x128xf32>
    %18 = arith.select %16, %12, %17 : vector<16x128xf32>
    %19 = vector.extract_strided_slice %4 {offsets = [0, 0, 128], sizes = [8, 16, 128], strides = [1, 1, 1]} : vector<8x16x384xf32> to vector<8x16x128xf32>
    %20 = vector.shape_cast %15 : vector<16x128xf32> to vector<1x16x128xf32>
    %21 = vector.extract_strided_slice %4 {offsets = [0, 0, 0], sizes = [7, 16, 128], strides = [1, 1, 1]} : vector<8x16x384xf32> to vector<7x16x128xf32>
    %22 = tpu.concatenate %20, %21 in 0 : vector<1x16x128xf32>, vector<7x16x128xf32> -> vector<8x16x128xf32>
    %23 = arith.addf %19, %22 : vector<8x16x128xf32>
    %24 = vector.extract_strided_slice %4 {offsets = [1, 0, 256], sizes = [7, 16, 128], strides = [1, 1, 1]} : vector<8x16x384xf32> to vector<7x16x128xf32>
    %25 = vector.shape_cast %18 : vector<16x128xf32> to vector<1x16x128xf32>
    %26 = tpu.concatenate %24, %25 in 0 : vector<7x16x128xf32>, vector<1x16x128xf32> -> vector<8x16x128xf32>
    %27 = arith.addf %23, %26 : vector<8x16x128xf32>
    %28 = vector.extract_strided_slice %27 {offsets = [0, 0, 0], sizes = [8, 16, 4], strides = [1, 1, 1]} : vector<8x16x128xf32> to vector<8x16x4xf32>
    %29 = vector.shape_cast %28 : vector<8x16x4xf32> to vector<8x64xf32>
    %30 = vector.extract_strided_slice %27 {offsets = [0, 0, 4], sizes = [8, 16, 4], strides = [1, 1, 1]} : vector<8x16x128xf32> to vector<8x16x4xf32>
    %31 = vector.shape_cast %30 : vector<8x16x4xf32> to vector<8x64xf32>
    %32 = vector.extract_strided_slice %27 {offsets = [0, 0, 8], sizes = [8, 16, 4], strides = [1, 1, 1]} : vector<8x16x128xf32> to vector<8x16x4xf32>
    %33 = vector.shape_cast %32 : vector<8x16x4xf32> to vector<8x64xf32>
    %cst_14 = arith.constant 0.000000e+00 : f32
    %34 = vector.broadcast %cst_14 : f32 to vector<8x4xf32>
    %35 = vector.extract_strided_slice %29 {offsets = [0, 0], sizes = [8, 60], strides = [1, 1]} : vector<8x64xf32> to vector<8x60xf32>
    %36 = tpu.concatenate %34, %35 in 1 : vector<8x4xf32>, vector<8x60xf32> -> vector<8x64xf32>
    %37 = arith.addf %31, %36 : vector<8x64xf32>
    %38 = vector.extract_strided_slice %33 {offsets = [0, 4], sizes = [8, 60], strides = [1, 1]} : vector<8x64xf32> to vector<8x60xf32>
    %39 = tpu.concatenate %38, %34 in 1 : vector<8x60xf32>, vector<8x4xf32> -> vector<8x64xf32>
    %40 = arith.addf %37, %39 : vector<8x64xf32>
    %c0_15 = arith.constant 0 : index
    %c0_16 = arith.constant 0 : index
    %41 = vector.load %arg6[%c0_15, %c0_16] : memref<1x64xf32, #tpu.memory_space<vmem>>, vector<1x64xf32>
    %42 = vector.broadcast %41 : vector<1x64xf32> to vector<8x64xf32>
    %43 = arith.addf %40, %42 : vector<8x64xf32>
    %c0_17 = arith.constant 0 : index
    %c0_18 = arith.constant 0 : index
    %c0_19 = arith.constant 0 : index
    %44 = vector.load %arg7[%c0_17, %c0_18, %c0_19] : memref<1x8x64xf32, #tpu.memory_space<vmem>>, vector<1x8x64xf32>
    %45 = vector.shape_cast %44 : vector<1x8x64xf32> to vector<8x64xf32>
    %46 = vector.shape_cast %43 : vector<8x64xf32> to vector<1x8x64xf32>
    tpu.vector_store %arg7[%c0_17, %c0_18, %c0_19], %46 {strides = array<i32>} : memref<1x8x64xf32, #tpu.memory_space<vmem>>, vector<1x8x64xf32>,
    return
  }
  func.func @transform_0(%arg0: i32, %arg1: i32) -> (i32, i32, i32) {
    %c0_i32 = arith.constant 0 : i32
    %c0_i32_0 = arith.constant 0 : i32
    return %arg0, %arg1, %c0_i32 : i32, i32, i32
  }
  func.func @transform_1(%arg0: i32, %arg1: i32) -> (i32, i32, i32) {
    %c8_i32 = arith.constant 8 : i32
    %0 = arith.muli %arg1, %c8_i32 : i32
    %c1_i32 = arith.constant 1 : i32
    %1 = arith.subi %0, %c1_i32 : i32
    %c0_i32 = arith.constant 0 : i32
    %2 = arith.maxsi %1, %c0_i32 : i32
    %c0_i32_0 = arith.constant 0 : i32
    %c0_i32_1 = arith.constant 0 : i32
    return %arg0, %2, %c0_i32_0 : i32, i32, i32
  }
  func.func @transform_2(%arg0: i32, %arg1: i32) -> (i32, i32, i32) {
    %c1_i32 = arith.constant 1 : i32
    %0 = arith.addi %arg1, %c1_i32 : i32
    %c8_i32 = arith.constant 8 : i32
    %1 = arith.muli %0, %c8_i32 : i32
    %c15_i32 = arith.constant 15 : i32
    %2 = arith.minsi %1, %c15_i32 : i32
    %c0_i32 = arith.constant 0 : i32
    %c0_i32_0 = arith.constant 0 : i32
    return %arg0, %2, %c0_i32 : i32, i32, i32
  }
  func.func @transform_3(%arg0: i32, %arg1: i32) -> (i32, i32) {
    %c0_i32 = arith.constant 0 : i32
    %c0_i32_0 = arith.constant 0 : i32
    %c0_i32_1 = arith.constant 0 : i32
    return %c0_i32, %c0_i32_0 : i32, i32
  }
  func.func @transform_4(%arg0: i32, %arg1: i32) -> (i32, i32) {
    %c0_i32 = arith.constant 0 : i32
    %c0_i32_0 = arith.constant 0 : i32
    %c0_i32_1 = arith.constant 0 : i32
    return %c0_i32, %c0_i32_0 : i32, i32
  }
  func.func @transform_5(%arg0: i32, %arg1: i32) -> (i32, i32, i32) {
    %c0_i32 = arith.constant 0 : i32
    %c0_i32_0 = arith.constant 0 : i32
    return %arg0, %arg1, %c0_i32 : i32, i32, i32
  }
}

</mosaic_0001>

<llo_original>
// kernel: tile.9
$region0: #{tile.9}
  %s0 = inlined_call_operand.vmem [shape: f32[16,4], index: 0, kind: input, shape index: {}]
  %s1 = inlined_call_operand.vmem [shape: f32[1,64], index: 1, kind: output, shape index: {}]
  $region1: #{tile.9} parent=0
    #allocation0 [shape = 'u8[4096]{0}', space=vmem, size = 0x1000, scoped, tag = 'scoped mem for output reshape']
    %v2 = vld [vmem:[%s0] sm:$0x1]
    %vm3 = vcmask 31744
    %4 = vst.msk [vmem:[#allocation0] sm:$0x1] %vm3, %v2
    %s5 = scalar_lea.vmem %s0, 15
    %v6 = vld [vmem:[%s5] sm:$0x1]
    %7 = vrot.lane.b32.xlu0 %v6, 60
    %v8 = vpop.permute.xlu0 %7
    %vm9 = vcmask 523744
    %10 = vst.msk [vmem:[#allocation0] sm:$0x1] %vm9, %v8
    %s11 = scalar_lea.vmem %s0, 14
    %v12 = vld [vmem:[%s11] sm:$0x1]
    %13 = vrot.lane.b32.xlu0 %v12, 56
    %v14 = vpop.permute.xlu0 %13
    %vm15 = vcmask 490944
    %16 = vst.msk [vmem:[#allocation0] sm:$0x1] %vm15, %v14
    %s17 = scalar_lea.vmem %s0, 13
    %v18 = vld [vmem:[%s17] sm:$0x1]
    %19 = vrot.lane.b32.xlu0 %v18, 52
    %v20 = vpop.permute.xlu0 %19
    %vm21 = vcmask 458144
    %22 = vst.msk [vmem:[#allocation0] sm:$0x1] %vm21, %v20
    %s23 = scalar_lea.vmem %s0, 12
    %v24 = vld [vmem:[%s23] sm:$0x1]
    %25 = vrot.lane.b32.xlu0 %v24, 48
    %v26 = vpop.permute.xlu0 %25
    %vm27 = vcmask 425344
    %28 = vst.msk [vmem:[#allocation0] sm:$0x1] %vm27, %v26
    %s29 = scalar_lea.vmem %s0, 11
    %v30 = vld [vmem:[%s29] sm:$0x1]
    %31 = vrot.lane.b32.xlu0 %v30, 44
    %v32 = vpop.permute.xlu0 %31
    %vm33 = vcmask 392544
    %34 = vst.msk [vmem:[#allocation0] sm:$0x1] %vm33, %v32
    %s35 = scalar_lea.vmem %s0, 10
    %v36 = vld [vmem:[%s35] sm:$0x1]
    %37 = vrot.lane.b32.xlu0 %v36, 40
    %v38 = vpop.permute.xlu0 %37
    %vm39 = vcmask 359744
    %40 = vst.msk [vmem:[#allocation0] sm:$0x1] %vm39, %v38
    %s41 = scalar_lea.vmem %s0, 9
    %v42 = vld [vmem:[%s41] sm:$0x1]
    %43 = vrot.lane.b32.xlu0 %v42, 36
    %v44 = vpop.permute.xlu0 %43
    %vm45 = vcmask 326944
    %46 = vst.msk [vmem:[#allocation0] sm:$0x1] %vm45, %v44
    %s47 = scalar_lea.vmem %s0, 8
    %v48 = vld [vmem:[%s47] sm:$0x1]
    %49 = vrot.lane.b32.xlu0 %v48, 32
    %v50 = vpop.permute.xlu0 %49
    %vm51 = vcmask 294144
    %52 = vst.msk [vmem:[#allocation0] sm:$0x1] %vm51, %v50
    %s53 = scalar_lea.vmem %s0, 7
    %v54 = vld [vmem:[%s53] sm:$0x1]
    %55 = vrot.lane.b32.xlu0 %v54, 28
    %v56 = vpop.permute.xlu0 %55
    %vm57 = vcmask 261344
    %58 = vst.msk [vmem:[#allocation0] sm:$0x1] %vm57, %v56
    %s59 = scalar_lea.vmem %s0, 6
    %v60 = vld [vmem:[%s59] sm:$0x1]
    %61 = vrot.lane.b32.xlu0 %v60, 24
    %v62 = vpop.permute.xlu0 %61
    %vm63 = vcmask 228544
    %64 = vst.msk [vmem:[#allocation0] sm:$0x1] %vm63, %v62
    %s65 = scalar_lea.vmem %s0, 5
    %v66 = vld [vmem:[%s65] sm:$0x1]
    %67 = vrot.lane.b32.xlu0 %v66, 20
    %v68 = vpop.permute.xlu0 %67
    %vm69 = vcmask 195744
    %70 = vst.msk [vmem:[#allocation0] sm:$0x1] %vm69, %v68
    %s71 = scalar_lea.vmem %s0, 4
    %v72 = vld [vmem:[%s71] sm:$0x1]
    %73 = vrot.lane.b32.xlu0 %v72, 16
    %v74 = vpop.permute.xlu0 %73
    %vm75 = vcmask 162944
    %76 = vst.msk [vmem:[#allocation0] sm:$0x1] %vm75, %v74
    %s77 = scalar_lea.vmem %s0, 3
    %v78 = vld [vmem:[%s77] sm:$0x1]
    %79 = vrot.lane.b32.xlu0 %v78, 12
    %v80 = vpop.permute.xlu0 %79
    %vm81 = vcmask 130144
    %82 = vst.msk [vmem:[#allocation0] sm:$0x1] %vm81, %v80
    %s83 = scalar_lea.vmem %s0, 2
    %v84 = vld [vmem:[%s83] sm:$0x1]
    %85 = vrot.lane.b32.xlu0 %v84, 8
    %v86 = vpop.permute.xlu0 %85
    %vm87 = vcmask 97344
    %88 = vst.msk [vmem:[#allocation0] sm:$0x1] %vm87, %v86
    %s89 = scalar_lea.vmem %s0, 1
    %v90 = vld [vmem:[%s89] sm:$0x1]
    %91 = vrot.lane.b32.xlu0 %v90, 4
    %v92 = vpop.permute.xlu0 %91
    %vm93 = vcmask 64544
    %94 = vst.msk [vmem:[#allocation0] sm:$0x1] %vm93, %v92
    %s96 = ssub.s32 2, 1
    %v97 = vld [vmem:[#allocation0] sm:%s96]
    %s99 = ssub.s32 2, 1
    %100 = vst [vmem:[%s1] sm:%s99] %v97

// kernel: tile.8
$region0: #{tile.8}
  #allocation0 [shape = 's32[1]{0}', space=sflag, size = 0x4, scoped, tag = 'scoped memory for tile.8']
  %s0 = inlined_call_operand.vmem [shape: f32[4], index: 0, kind: input, shape index: {}]
  %s1 = inlined_call_operand.vmem [shape: f32[16,4], index: 1, kind: output, shape index: {}]
  // Predicated region
  $region2: #{tile.8} parent=0 // pred_check
    _
  $region3: #{tile.8} parent=0 // pred_check_branch
    %3 = sbr.rel (0) target = $region5
  $region4: #{tile.8} parent=0 // pred_region
    _
  $region5: #{tile.8} parent=0 // pred_fallthru
    _
  %v4 = vld [vmem:[%s0] ss:$0 sm:$0xff]
  %5 = vst [vmem:[%s1] sm:$0xff] %v4
  %s6 = scalar_lea.vmem %s1, 8
  %7 = vst [vmem:[%s6] sm:$0xff] %v4

// kernel: seqconv3x3_forward.1
$region0: #{seqconv3x3_forward.1}
  #allocation0 [shape = 'u32[]', space=smem, size = 0x4, offset = 0x4, fixed_abs, tag = 'smem constant byte address 0x4 - core index']
  #allocation1 [shape = 'u32[72,128]{1,0:T(1,128)}', space=vmem, size = 0x9000, scoped, tag = 'internal scratch']
  %s0 = inlined_call_operand.vmem [shape: f32[2,256,4], index: 0, kind: input, shape index: {}, may-alias: {0,1,2}]
  %s1 = inlined_call_operand.vmem [shape: f32[2,256,4], index: 1, kind: input, shape index: {}, may-alias: {0,1,2}]
  %s2 = inlined_call_operand.vmem [shape: f32[2,256,4], index: 2, kind: input, shape index: {}, may-alias: {0,1,2}]
  %s3 = inlined_call_operand.vmem [shape: f32[4,384], index: 3, kind: input, shape index: {}]
  %s4 = inlined_call_operand.vmem [shape: f32[1,64], index: 4, kind: input, shape index: {}]
  %s5 = inlined_call_operand.vmem [shape: f32[2,16,64], index: 5, kind: output, shape index: {}]
  %s6 = sld [smem:[#allocation0]]
  $region53: #{seqconv3x3_forward.1} parent=0
    _
  %s8 = ssub.s32 1, %s6
  %s9 = scalar_select 0, %s8, %s6
  loop: start=0, step=1, limit=6
  $region2: #{seqconv3x3_forward.1} parent=0 // loop_pre_header
    _
  $region3: #{seqconv3x3_forward.1} parent=0 // loop_header
    %s11 = sphi 0, %s15
    %p12 = scmp.ge.s32.totalorder %s11, 6
    %s18 = sphi 0, %s30
    %s19 = sphi 0, %s26
    %s20 = sphi 0, %s18
    %s21 = sphi 0, %s19
    %s22 = sphi 0, %s20
    %s23 = sphi 0, %s21
    %s35 = sphi 0, %s37
    %s38 = sphi 0, %s35
    %s39 = sphi 0, %s38
    %s55 = sphi 0, %s39
    %s71 = sphi 0, %s73
    %s74 = sphi 0, %s71
    %s75 = sphi 0, %s74
    %s91 = sphi 0, %s75
    %s107 = sphi 0, %s109
    %s110 = sphi 0, %s107
    %s111 = sphi 0, %s110
    %s127 = sphi 0, %s111
    %s131 = sphi 0, %s131
    %s133 = sphi 0, %s131
    %s134 = sphi 0, %s133
    %s148 = sphi 0, %s134
    %s152 = sphi 0, %s152
    %s154 = sphi 0, %s152
    %s155 = sphi 0, %s154
    %s169 = sphi 0, %s155
    %s177 = sphi 0, %s179
    %s180 = sphi 0, %s177
    %s181 = sphi 0, %s180
    %s197 = sphi 0, %s181
  $region4: #{seqconv3x3_forward.1} parent=0 // loop_header_branch
    %14 = sbr.rel (%p12) target = $region8
  $region5: #{seqconv3x3_forward.1} parent=0 // loop_body
    %s16 = ssub.s32 %s11, 1
    %s17 = ssub.s32 %s11, 2
    %s24 = sadd.s32 1, %s19
    %p25 = scmp.ge.s32.totalorder %s24, 2
    %s26 = scalar_select %p25, 0, %s24
    %s27 = sadd.s32 1, %s18
    %s28 = scalar_select %p25, %s27, %s18
    %p29 = scmp.ge.s32.totalorder %s28, 2
    %s30 = scalar_select %p29, 0, %s28
    %s31 = ssub.s32 %s18, %s30
    %s32 = ssub.s32 %s19, %s26
    %s33 = sor.u32 %s31, %s32
    %p34 = scmp.eq.s32.totalorder %s33, 0
    %s36 = sadd.s32 %s35, 1
    %s37 = scalar_select %p34, %s35, %s36
    %p40 = pneg %p34
    %p41 = scmp.eq.s32.totalorder %s11, 3
    %p42 = por %p40, %p41
    %p43 = scmp.ne.s32.totalorder %s35, %s38
    %p44 = scmp.eq.s32.totalorder %s11, 0
    %p45 = por %p43, %p44
    %p46 = scmp.ne.s32.totalorder %s35, %s38
    %p47 = scmp.eq.s32.totalorder %s16, 3
    %p48 = por %p46, %p47
    %p49 = scmp.ne.s32.totalorder %s38, %s39
    %p50 = scmp.eq.s32.totalorder %s16, 0
    %p51 = por %p49, %p50
    %p52 = scmp.ne.s32.totalorder %s38, %s39
    %p53 = scmp.eq.s32.totalorder %s17, 3
    %p54 = por %p52, %p53
    %p56 = scmp.ne.s32.totalorder %s39, %s55
    %p57 = scmp.eq.s32.totalorder %s17, 0
    %p58 = por %p56, %p57
    %s59 = smul.u32 %s19, 8
    %s60 = ssub.s32 %s59, 1
    %p61 = scmp.gt.s32.totalorder %s60, 0
    %s62 = scalar_select %p61, %s60, 0
    %s63 = smul.u32 %s26, 8
    %s64 = ssub.s32 %s63, 1
    %p65 = scmp.gt.s32.totalorder %s64, 0
    %s66 = scalar_select %p65, %s64, 0
    %s67 = ssub.s32 %s18, %s30
    %s68 = ssub.s32 %s62, %s66
    %s69 = sor.u32 %s67, %s68
    %p70 = scmp.eq.s32.totalorder %s69, 0
    %s72 = sadd.s32 %s71, 1
    %s73 = scalar_select %p70, %s71, %s72
    %p76 = pneg %p70
    %p77 = scmp.eq.s32.totalorder %s11, 3
    %p78 = por %p76, %p77
    %p79 = scmp.ne.s32.totalorder %s71, %s74
    %p80 = scmp.eq.s32.totalorder %s11, 0
    %p81 = por %p79, %p80
    %p82 = scmp.ne.s32.totalorder %s71, %s74
    %p83 = scmp.eq.s32.totalorder %s16, 3
    %p84 = por %p82, %p83
    %p85 = scmp.ne.s32.totalorder %s74, %s75
    %p86 = scmp.eq.s32.totalorder %s16, 0
    %p87 = por %p85, %p86
    %p88 = scmp.ne.s32.totalorder %s74, %s75
    %p89 = scmp.eq.s32.totalorder %s17, 3
    %p90 = por %p88, %p89
    %p92 = scmp.ne.s32.totalorder %s75, %s91
    %p93 = scmp.eq.s32.totalorder %s17, 0
    %p94 = por %p92, %p93
    %s95 = sadd.s32 %s19, 1
    %s96 = smul.u32 %s95, 8
    %p97 = scmp.lt.s32.totalorder %s96, 15
    %s98 = scalar_select %p97, %s96, 15
    %s99 = sadd.s32 %s26, 1
    %s100 = smul.u32 %s99, 8
    %p101 = scmp.lt.s32.totalorder %s100, 15
    %s102 = scalar_select %p101, %s100, 15
    %s103 = ssub.s32 %s18, %s30
    %s104 = ssub.s32 %s98, %s102
    %s105 = sor.u32 %s103, %s104
    %p106 = scmp.eq.s32.totalorder %s105, 0
    %s108 = sadd.s32 %s107, 1
    %s109 = scalar_select %p106, %s107, %s108
    %p112 = pneg %p106
    %p113 = scmp.eq.s32.totalorder %s11, 3
    %p114 = por %p112, %p113
    %p115 = scmp.ne.s32.totalorder %s107, %s110
    %p116 = scmp.eq.s32.totalorder %s11, 0
    %p117 = por %p115, %p116
    %p118 = scmp.ne.s32.totalorder %s107, %s110
    %p119 = scmp.eq.s32.totalorder %s16, 3
    %p120 = por %p118, %p119
    %p121 = scmp.ne.s32.totalorder %s110, %s111
    %p122 = scmp.eq.s32.totalorder %s16, 0
    %p123 = por %p121, %p122
    %p124 = scmp.ne.s32.totalorder %s110, %s111
    %p125 = scmp.eq.s32.totalorder %s17, 3
    %p126 = por %p124, %p125
    %p128 = scmp.ne.s32.totalorder %s111, %s127
    %p129 = scmp.eq.s32.totalorder %s17, 0
    %p130 = por %p128, %p129
    %s132 = sadd.s32 %s131, 1
    %p135 = scmp.eq.s32.totalorder %s11, 3
    %p136 = scmp.ne.s32.totalorder %s131, %s133
    %p137 = scmp.eq.s32.totalorder %s11, 0
    %p138 = por %p136, %p137
    %p139 = scmp.ne.s32.totalorder %s131, %s133
    %p140 = scmp.eq.s32.totalorder %s16, 3
    %p141 = por %p139, %p140
    %p142 = scmp.ne.s32.totalorder %s133, %s134
    %p143 = scmp.eq.s32.totalorder %s16, 0
    %p144 = por %p142, %p143
    %p145 = scmp.ne.s32.totalorder %s133, %s134
    %p146 = scmp.eq.s32.totalorder %s17, 3
    %p147 = por %p145, %p146
    %p149 = scmp.ne.s32.totalorder %s134, %s148
    %p150 = scmp.eq.s32.totalorder %s17, 0
    %p151 = por %p149, %p150
    %s153 = sadd.s32 %s152, 1
    %p156 = scmp.eq.s32.totalorder %s11, 3
    %p157 = scmp.ne.s32.totalorder %s152, %s154
    %p158 = scmp.eq.s32.totalorder %s11, 0
    %p159 = por %p157, %p158
    %p160 = scmp.ne.s32.totalorder %s152, %s154
    %p161 = scmp.eq.s32.totalorder %s16, 3
    %p162 = por %p160, %p161
    %p163 = scmp.ne.s32.totalorder %s154, %s155
    %p164 = scmp.eq.s32.totalorder %s16, 0
    %p165 = por %p163, %p164
    %p166 = scmp.ne.s32.totalorder %s154, %s155
    %p167 = scmp.eq.s32.totalorder %s17, 3
    %p168 = por %p166, %p167
    %p170 = scmp.ne.s32.totalorder %s155, %s169
    %p171 = scmp.eq.s32.totalorder %s17, 0
    %p172 = por %p170, %p171
    %s173 = ssub.s32 %s18, %s30
    %s174 = ssub.s32 %s19, %s26
    %s175 = sor.u32 %s173, %s174
    %p176 = scmp.eq.s32.totalorder %s175, 0
    %s178 = sadd.s32 %s177, 1
    %s179 = scalar_select %p176, %s177, %s178
    %p182 = pneg %p176
    %p183 = scmp.eq.s32.totalorder %s11, 3
    %p184 = por %p182, %p183
    %p185 = scmp.ne.s32.totalorder %s177, %s180
    %p186 = scmp.eq.s32.totalorder %s11, 0
    %p187 = por %p185, %p186
    %p188 = scmp.ne.s32.totalorder %s177, %s180
    %p189 = scmp.eq.s32.totalorder %s16, 3
    %p190 = por %p188, %p189
    %p191 = scmp.ne.s32.totalorder %s180, %s181
    %p192 = scmp.eq.s32.totalorder %s16, 0
    %p193 = por %p191, %p192
    %p194 = scmp.ne.s32.totalorder %s180, %s181
    %p195 = scmp.eq.s32.totalorder %s17, 3
    %p196 = por %p194, %p195
    %p198 = scmp.ne.s32.totalorder %s181, %s197
    %p199 = scmp.eq.s32.totalorder %s17, 0
    %p200 = por %p198, %p199
    %p201 = scmp.le.s32.totalorder 1, %s11
    %p202 = scmp.lt.s32.totalorder %s11, 5
    %p203 = pnand %p201, %p202
    %p204 = pneg %p203
    // Predicated region
    $region9: #{seqconv3x3_forward.1} parent=5 // pred_check
      _
    $region10: #{seqconv3x3_forward.1} parent=5 // pred_check_branch
      %206 = sbr.rel (%p203) target = $region12
    $region11: #{seqconv3x3_forward.1} parent=5 // pred_region
      %s207 = ssub.s32 %s11, 1
      // Predicated region
      $region13: #{seqconv3x3_forward.1} parent=11 // pred_check
        %p208 = pneg %p144
      $region14: #{seqconv3x3_forward.1} parent=11 // pred_check_branch
        %210 = sbr.rel (%p208) target = $region16
      $region15: #{seqconv3x3_forward.1} parent=11 // pred_region
        _
      $region16: #{seqconv3x3_forward.1} parent=11 // pred_fallthru
        _
      // Predicated region
      $region17: #{seqconv3x3_forward.1} parent=11 // pred_check
        %p211 = pneg %p165
      $region18: #{seqconv3x3_forward.1} parent=11 // pred_check_branch
        %213 = sbr.rel (%p211) target = $region20
      $region19: #{seqconv3x3_forward.1} parent=11 // pred_region
        _
      $region20: #{seqconv3x3_forward.1} parent=11 // pred_fallthru
        _
    $region12: #{seqconv3x3_forward.1} parent=5 // pred_fallthru
      _
    %p214 = scmp.lt.s32.totalorder %s11, 4
    // Predicated region
    $region21: #{seqconv3x3_forward.1} parent=5 // pred_check
      %p215 = pneg %p214
    $region22: #{seqconv3x3_forward.1} parent=5 // pred_check_branch
      %217 = sbr.rel (%p215) target = $region24
    $region23: #{seqconv3x3_forward.1} parent=5 // pred_region
      // Predicated region
      $region25: #{seqconv3x3_forward.1} parent=23 // pred_check
        %p218 = pneg %p45
      $region26: #{seqconv3x3_forward.1} parent=23 // pred_check_branch
        %220 = sbr.rel (%p218) target = $region28
      $region27: #{seqconv3x3_forward.1} parent=23 // pred_region
        %s221 = smul.u32 16, %s19
        %p222 = scmp.lt.s32.totalorder %s18, 1
        %s223 = scalar_select %p222, %s18, 1
        %p224 = scmp.lt.s32.totalorder %s221, 31
        %s225 = scalar_select %p224, %s221, 31
        %s226 = smul.addr %s223, 32
        %s227 = sadd.s32 %s225, %s226
        %s228 = smul.addr %s227, 8
        %s229 = scalar_lea.vmem %s0, %s228
        %s230 = smul.u32 16, %s19
      $region28: #{seqconv3x3_forward.1} parent=23 // pred_fallthru
        _
      // Predicated region
      $region29: #{seqconv3x3_forward.1} parent=23 // pred_check
        %p231 = pneg %p81
      $region30: #{seqconv3x3_forward.1} parent=23 // pred_check_branch
        %233 = sbr.rel (%p231) target = $region32
      $region31: #{seqconv3x3_forward.1} parent=23 // pred_region
        %s234 = smul.u32 %s19, 8
        %s235 = ssub.s32 %s234, 1
        %p236 = scmp.gt.s32.totalorder %s235, 0
        %s237 = scalar_select %p236, %s235, 0
        %s238 = smul.u32 2, %s237
        %p239 = scmp.lt.s32.totalorder %s18, 1
        %s240 = scalar_select %p239, %s18, 1
        %p241 = scmp.lt.s32.totalorder %s238, 31
        %s242 = scalar_select %p241, %s238, 31
        %s243 = smul.addr %s240, 32
        %s244 = sadd.s32 %s242, %s243
        %s245 = smul.addr %s244, 8
        %s246 = scalar_lea.vmem %s1, %s245
        %s247 = smul.u32 %s19, 8
        %s248 = ssub.s32 %s247, 1
        %p249 = scmp.gt.s32.totalorder %s248, 0
        %s250 = scalar_select %p249, %s248, 0
        %s251 = smul.u32 2, %s250
      $region32: #{seqconv3x3_forward.1} parent=23 // pred_fallthru
        _
      // Predicated region
      $region33: #{seqconv3x3_forward.1} parent=23 // pred_check
        %p252 = pneg %p117
      $region34: #{seqconv3x3_forward.1} parent=23 // pred_check_branch
        %254 = sbr.rel (%p252) target = $region36
      $region35: #{seqconv3x3_forward.1} parent=23 // pred_region
        %s255 = sadd.s32 %s19, 1
        %s256 = smul.u32 %s255, 8
        %p257 = scmp.lt.s32.totalorder %s256, 15
        %s258 = scalar_select %p257, %s256, 15
        %s259 = smul.u32 2, %s258
        %p260 = scmp.lt.s32.totalorder %s18, 1
        %s261 = scalar_select %p260, %s18, 1
        %p262 = scmp.lt.s32.totalorder %s259, 31
        %s263 = scalar_select %p262, %s259, 31
        %s264 = smul.addr %s261, 32
        %s265 = sadd.s32 %s263, %s264
        %s266 = smul.addr %s265, 8
        %s267 = scalar_lea.vmem %s2, %s266
        %s268 = sadd.s32 %s19, 1
        %s269 = smul.u32 %s268, 8
        %p270 = scmp.lt.s32.totalorder %s269, 15
        %s271 = scalar_select %p270, %s269, 15
        %s272 = smul.u32 2, %s271
      $region36: #{seqconv3x3_forward.1} parent=23 // pred_fallthru
        _
    $region24: #{seqconv3x3_forward.1} parent=5 // pred_fallthru
      _
    %p273 = scmp.le.s32.totalorder 1, %s11
    %p274 = scmp.lt.s32.totalorder %s11, 5
    %p275 = pnand %p273, %p274
    %p276 = pneg %p275
    // Predicated region
    $region37: #{seqconv3x3_forward.1} parent=5 // pred_check
      _
    $region38: #{seqconv3x3_forward.1} parent=5 // pred_check_branch
      %278 = sbr.rel (%p275) target = $region40
    $region39: #{seqconv3x3_forward.1} parent=5 // pred_region
      %s279 = ssub.s32 %s11, 1
      %s280 = smul.u32 16, %s21
      %p281 = scmp.lt.s32.totalorder %s20, 1
      %s282 = scalar_select %p281, %s20, 1
      %p283 = scmp.lt.s32.totalorder %s280, 31
      %s284 = scalar_select %p283, %s280, 31
      %s285 = smul.addr %s282, 32
      %s286 = sadd.s32 %s284, %s285
      %s287 = smul.addr %s286, 8
      %s288 = scalar_lea.vmem %s0, %s287
      %p289 = pneg %p51
      %p290 = pneg %p48
      %s291 = smul.u32 %s21, 8
      %s292 = ssub.s32 %s291, 1
      %p293 = scmp.gt.s32.totalorder %s292, 0
      %s294 = scalar_select %p293, %s292, 0
      %s295 = smul.u32 2, %s294
      %p296 = scmp.lt.s32.totalorder %s20, 1
      %s297 = scalar_select %p296, %s20, 1
      %p298 = scmp.lt.s32.totalorder %s295, 31
      %s299 = scalar_select %p298, %s295, 31
      %s300 = smul.addr %s297, 32
      %s301 = sadd.s32 %s299, %s300
      %s302 = smul.addr %s301, 8
      %s303 = scalar_lea.vmem %s1, %s302
      %p304 = pneg %p87
      %p305 = pneg %p84
      %s306 = sadd.s32 %s21, 1
      %s307 = smul.u32 %s306, 8
      %p308 = scmp.lt.s32.totalorder %s307, 15
      %s309 = scalar_select %p308, %s307, 15
      %s310 = smul.u32 2, %s309
      %p311 = scmp.lt.s32.totalorder %s20, 1
      %s312 = scalar_select %p311, %s20, 1
      %p313 = scmp.lt.s32.totalorder %s310, 31
      %s314 = scalar_select %p313, %s310, 31
      %s315 = smul.addr %s312, 32
      %s316 = sadd.s32 %s314, %s315
      %s317 = smul.addr %s316, 8
      %s318 = scalar_lea.vmem %s2, %s317
      %p319 = pneg %p123
      %p320 = pneg %p120
      %p321 = pneg %p144
      %p322 = pneg %p141
      %p323 = pneg %p165
      %p324 = pneg %p162
      %p325 = pneg %p193
      %p326 = pneg %p190
      %p327 = scmp.lt.s32.totalorder %s20, 1
      %s328 = scalar_select %p327, %s20, 1
      %p329 = scmp.lt.s32.totalorder %s21, 1
      %s330 = scalar_select %p329, %s21, 1
      %s331 = smul.addr %s328, 2
      %s332 = sadd.s32 %s330, %s331
      %s333 = smul.addr %s332, 8
      %s334 = scalar_lea.vmem %s5, %s333
      %s335 = smul.u32 16, %s21
      %p336 = scmp.lt.s32.totalorder %s20, 1
      %s337 = scalar_select %p336, %s20, 1
      %p338 = scmp.lt.s32.totalorder %s335, 31
      %s339 = scalar_select %p338, %s335, 31
      %s340 = smul.addr %s337, 32
      %s341 = sadd.s32 %s339, %s340
      %s342 = smul.addr %s341, 8
      %s343 = scalar_lea.vmem %s0, %s342
      %s344 = smul.u32 16, %s21
      %s345 = smul.u32 %s21, 8
      %s346 = ssub.s32 %s345, 1
      %p347 = scmp.gt.s32.totalorder %s346, 0
      %s348 = scalar_select %p347, %s346, 0
      %s349 = smul.u32 2, %s348
      %p350 = scmp.lt.s32.totalorder %s20, 1
      %s351 = scalar_select %p350, %s20, 1
      %p352 = scmp.lt.s32.totalorder %s349, 31
      %s353 = scalar_select %p352, %s349, 31
      %s354 = smul.addr %s351, 32
      %s355 = sadd.s32 %s353, %s354
      %s356 = smul.addr %s355, 8
      %s357 = scalar_lea.vmem %s1, %s356
      %s358 = smul.u32 %s21, 8
      %s359 = ssub.s32 %s358, 1
      %p360 = scmp.gt.s32.totalorder %s359, 0
      %s361 = scalar_select %p360, %s359, 0
      %s362 = smul.u32 2, %s361
      %s363 = sadd.s32 %s21, 1
      %s364 = smul.u32 %s363, 8
      %p365 = scmp.lt.s32.totalorder %s364, 15
      %s366 = scalar_select %p365, %s364, 15
      %s367 = smul.u32 2, %s366
      %p368 = scmp.lt.s32.totalorder %s20, 1
      %s369 = scalar_select %p368, %s20, 1
      %p370 = scmp.lt.s32.totalorder %s367, 31
      %s371 = scalar_select %p370, %s367, 31
      %s372 = smul.addr %s369, 32
      %s373 = sadd.s32 %s371, %s372
      %s374 = smul.addr %s373, 8
      %s375 = scalar_lea.vmem %s2, %s374
      %s376 = sadd.s32 %s21, 1
      %s377 = smul.u32 %s376, 8
      %p378 = scmp.lt.s32.totalorder %s377, 15
      %s379 = scalar_select %p378, %s377, 15
      %s380 = smul.u32 2, %s379
      %p381 = scmp.lt.s32.totalorder %s20, 1
      %s382 = scalar_select %p381, %s20, 1
      %p383 = scmp.lt.s32.totalorder %s21, 1
      %s384 = scalar_select %p383, %s21, 1
      %s385 = smul.addr %s382, 2
      %s386 = sadd.s32 %s384, %s385
      %s387 = smul.addr %s386, 8
      %s388 = scalar_lea.vmem %s5, %s387
      %v389 = vld [vmem:[%s3] sm:$0xff]
      %v390 = vld [vmem:[%s3 + $0x8] sm:$0xf]
      %v391 = vld [vmem:[%s343] sm:$0xff]
      %v392 = vld [vmem:[%s343 + $0x8] sm:$0xff]
      %v393 = vld [vmem:[%s343 + $0x10] sm:$0xff]
      %v394 = vld [vmem:[%s343 + $0x18] sm:$0xff]
      %v395 = vld [vmem:[%s343 + $0x20] sm:$0xff]
      %v396 = vld [vmem:[%s343 + $0x28] sm:$0xff]
      %v397 = vld [vmem:[%s343 + $0x30] sm:$0xff]
      %v398 = vld [vmem:[%s343 + $0x38] sm:$0xff]
      %v399 = vld [vmem:[%s343 + $0x40] sm:$0xff]
      %v400 = vld [vmem:[%s343 + $0x48] sm:$0xff]
      %v401 = vld [vmem:[%s343 + $0x50] sm:$0xff]
      %v402 = vld [vmem:[%s343 + $0x58] sm:$0xff]
      %v403 = vld [vmem:[%s343 + $0x60] sm:$0xff]
      %v404 = vld [vmem:[%s343 + $0x68] sm:$0xff]
      %v405 = vld [vmem:[%s343 + $0x70] sm:$0xff]
      %v406 = vld [vmem:[%s343 + $0x78] sm:$0xff]
      %409 = vst [vmem:[#allocation1] ss:$2 sm:$0xff] %v389
      %s410 = scalar_lea.vmem [#allocation1], 16
      %411 = vst [vmem:[%s410] ss:$2 sm:$0xff] %v390
      %v412 = vld.sshfl [vmem:[#allocation1] sm:$0xff pattern:$0x75316420]
      %v413 = vld.sshfl [vmem:[#allocation1 + $0x8] sm:$0xff pattern:$0x75316420]
      %v414 = vld.sshfl [vmem:[#allocation1 + $0x10] sm:$0xff pattern:$0x75316420]
      %vm415 = vcmask 31744
      %v417 = vsel %vm415, %v391, 0
      %v420 = vsel %vm415, %v392, 0
      %v423 = vsel %vm415, %v393, 0
      %v426 = vsel %vm415, %v394, 0
      %v429 = vsel %vm415, %v395, 0
      %v432 = vsel %vm415, %v396, 0
      %v435 = vsel %vm415, %v397, 0
      %v438 = vsel %vm415, %v398, 0
      %v441 = vsel %vm415, %v399, 0
      %v444 = vsel %vm415, %v400, 0
      %v447 = vsel %vm415, %v401, 0
      %v450 = vsel %vm415, %v402, 0
      %v453 = vsel %vm415, %v403, 0
      %v456 = vsel %vm415, %v404, 0
      %v459 = vsel %vm415, %v405, 0
      %v462 = vsel %vm415, %v406, 0
      %vm464 = vcmask 1043456
      %v465 = vsel %vm464, %v412, 0
      %v467 = vsel %vm464, %v413, 0
      %v469 = vsel %vm464, %v414, 0
      %471 = vmatpush.msra.mxu0 0.0
      %472 = vmatpush.msra.mxu0 0.0
      %473 = vmatpush.msra.mxu0 0.0
      %474 = vmatpush.msra.mxu0 0.0
      %475 = vmatpush.msra.mxu0 0.0
      %476 = vmatpush.msra.mxu0 0.0
      %477 = vmatpush.msra.mxu0 0.0
      %478 = vmatpush.msra.mxu0 0.0
      %479 = vmatpush.msra.mxu0 0.0
      %480 = vmatpush.msra.mxu0 0.0
      %481 = vmatpush.msra.mxu0 0.0
      %482 = vmatpush.msra.mxu0 0.0
      %483 = vmatpush.msra.mxu0 0.0
      %484 = vmatpush.msra.mxu0 0.0
      %485 = vmatpush.msra.mxu0 0.0
      %486 = vmatpush.msra.mxu0 %v465
      %487 = vmatmul.f32.gmra.mxu0 %v417
      %v488 = vpop.f32.mrf.mxu0
      %v489 = vadd.f32 0.0, %v488
      %490 = vmatmul.f32.gmra.mxu0 %v420
      %v491 = vpop.f32.mrf.mxu0
      %v492 = vadd.f32 0.0, %v491
      %493 = vmatmul.f32.gmra.mxu0 %v423
      %v494 = vpop.f32.mrf.mxu0
      %v495 = vadd.f32 0.0, %v494
      %496 = vmatmul.f32.gmra.mxu0 %v426
      %v497 = vpop.f32.mrf.mxu0
      %v498 = vadd.f32 0.0, %v497
      %499 = vmatmul.f32.gmra.mxu0 %v429
      %v500 = vpop.f32.mrf.mxu0
      %v501 = vadd.f32 0.0, %v500
      %502 = vmatmul.f32.gmra.mxu0 %v432
      %v503 = vpop.f32.mrf.mxu0
      %v504 = vadd.f32 0.0, %v503
      %505 = vmatmul.f32.gmra.mxu0 %v435
      %v506 = vpop.f32.mrf.mxu0
      %v507 = vadd.f32 0.0, %v506
      %508 = vmatmul.f32.gmra.mxu0 %v438
      %v509 = vpop.f32.mrf.mxu0
      %v510 = vadd.f32 0.0, %v509
      %511 = vmatmul.f32.gmra.mxu0 %v441
      %v512 = vpop.f32.mrf.mxu0
      %v513 = vadd.f32 0.0, %v512
      %514 = vmatmul.f32.gmra.mxu0 %v444
      %v515 = vpop.f32.mrf.mxu0
      %v516 = vadd.f32 0.0, %v515
      %517 = vmatmul.f32.gmra.mxu0 %v447
      %v518 = vpop.f32.mrf.mxu0
      %v519 = vadd.f32 0.0, %v518
      %520 = vmatmul.f32.gmra.mxu0 %v450
      %v521 = vpop.f32.mrf.mxu0
      %v522 = vadd.f32 0.0, %v521
      %523 = vmatmul.f32.gmra.mxu0 %v453
      %v524 = vpop.f32.mrf.mxu0
      %v525 = vadd.f32 0.0, %v524
      %526 = vmatmul.f32.gmra.mxu0 %v456
      %v527 = vpop.f32.mrf.mxu0
      %v528 = vadd.f32 0.0, %v527
      %529 = vmatmul.f32.gmra.mxu0 %v459
      %v530 = vpop.f32.mrf.mxu0
      %531 = vmatmul.f32.gmra.mxu0 %v462
      %v532 = vpop.f32.mrf.mxu0
      %533 = vdwg.mxu0
      %534 = vmatpush.msra.mxu0 0.0
      %535 = vmatpush.msra.mxu0 0.0
      %536 = vmatpush.msra.mxu0 0.0
      %537 = vmatpush.msra.mxu0 0.0
      %538 = vmatpush.msra.mxu0 0.0
      %539 = vmatpush.msra.mxu0 0.0
      %540 = vmatpush.msra.mxu0 0.0
      %541 = vmatpush.msra.mxu0 0.0
      %542 = vmatpush.msra.mxu0 0.0
      %543 = vmatpush.msra.mxu0 0.0
      %544 = vmatpush.msra.mxu0 0.0
      %545 = vmatpush.msra.mxu0 0.0
      %546 = vmatpush.msra.mxu0 0.0
      %547 = vmatpush.msra.mxu0 0.0
      %548 = vmatpush.msra.mxu0 0.0
      %549 = vmatpush.msra.mxu0 %v467
      %550 = vmatmul.f32.gmra.mxu0 %v417
      %v551 = vpop.f32.mrf.mxu0
      %v552 = vadd.f32 0.0, %v551
      %553 = vmatmul.f32.gmra.mxu0 %v420
      %v554 = vpop.f32.mrf.mxu0
      %v555 = vadd.f32 0.0, %v554
      %556 = vmatmul.f32.gmra.mxu0 %v423
      %v557 = vpop.f32.mrf.mxu0
      %v558 = vadd.f32 0.0, %v557
      %559 = vmatmul.f32.gmra.mxu0 %v426
      %v560 = vpop.f32.mrf.mxu0
      %v561 = vadd.f32 0.0, %v560
      %562 = vmatmul.f32.gmra.mxu0 %v429
      %v563 = vpop.f32.mrf.mxu0
      %v564 = vadd.f32 0.0, %v563
      %565 = vmatmul.f32.gmra.mxu0 %v432
      %v566 = vpop.f32.mrf.mxu0
      %v567 = vadd.f32 0.0, %v566
      %568 = vmatmul.f32.gmra.mxu0 %v435
      %v569 = vpop.f32.mrf.mxu0
      %v570 = vadd.f32 0.0, %v569
      %571 = vmatmul.f32.gmra.mxu0 %v438
      %v572 = vpop.f32.mrf.mxu0
      %v573 = vadd.f32 0.0, %v572
      %574 = vmatmul.f32.gmra.mxu0 %v441
      %v575 = vpop.f32.mrf.mxu0
      %v576 = vadd.f32 0.0, %v575
      %577 = vmatmul.f32.gmra.mxu0 %v444
      %v578 = vpop.f32.mrf.mxu0
      %v579 = vadd.f32 0.0, %v578
      %580 = vmatmul.f32.gmra.mxu0 %v447
      %v581 = vpop.f32.mrf.mxu0
      %v582 = vadd.f32 0.0, %v581
      %583 = vmatmul.f32.gmra.mxu0 %v450
      %v584 = vpop.f32.mrf.mxu0
      %v585 = vadd.f32 0.0, %v584
      %586 = vmatmul.f32.gmra.mxu0 %v453
      %v587 = vpop.f32.mrf.mxu0
      %v588 = vadd.f32 0.0, %v587
      %589 = vmatmul.f32.gmra.mxu0 %v456
      %v590 = vpop.f32.mrf.mxu0
      %v591 = vadd.f32 0.0, %v590
      %592 = vmatmul.f32.gmra.mxu0 %v459
      %v593 = vpop.f32.mrf.mxu0
      %v594 = vadd.f32 0.0, %v593
      %595 = vmatmul.f32.gmra.mxu0 %v462
      %v596 = vpop.f32.mrf.mxu0
      %v597 = vadd.f32 0.0, %v596
      %598 = vdwg.mxu0
      %599 = vmatpush.msra.mxu0 0.0
      %600 = vmatpush.msra.mxu0 0.0
      %601 = vmatpush.msra.mxu0 0.0
      %602 = vmatpush.msra.mxu0 0.0
      %603 = vmatpush.msra.mxu0 0.0
      %604 = vmatpush.msra.mxu0 0.0
      %605 = vmatpush.msra.mxu0 0.0
      %606 = vmatpush.msra.mxu0 0.0
      %607 = vmatpush.msra.mxu0 0.0
      %608 = vmatpush.msra.mxu0 0.0
      %609 = vmatpush.msra.mxu0 0.0
      %610 = vmatpush.msra.mxu0 0.0
      %611 = vmatpush.msra.mxu0 0.0
      %612 = vmatpush.msra.mxu0 0.0
      %613 = vmatpush.msra.mxu0 0.0
      %614 = vmatpush.msra.mxu0 %v469
      %615 = vmatmul.f32.gmra.mxu0 %v417
      %v616 = vpop.f32.mrf.mxu0
      %617 = vmatmul.f32.gmra.mxu0 %v420
      %v618 = vpop.f32.mrf.mxu0
      %619 = vmatmul.f32.gmra.mxu0 %v423
      %v620 = vpop.f32.mrf.mxu0
      %v621 = vadd.f32 0.0, %v620
      %622 = vmatmul.f32.gmra.mxu0 %v426
      %v623 = vpop.f32.mrf.mxu0
      %v624 = vadd.f32 0.0, %v623
      %625 = vmatmul.f32.gmra.mxu0 %v429
      %v626 = vpop.f32.mrf.mxu0
      %v627 = vadd.f32 0.0, %v626
      %628 = vmatmul.f32.gmra.mxu0 %v432
      %v629 = vpop.f32.mrf.mxu0
      %v630 = vadd.f32 0.0, %v629
      %631 = vmatmul.f32.gmra.mxu0 %v435
      %v632 = vpop.f32.mrf.mxu0
      %v633 = vadd.f32 0.0, %v632
      %634 = vmatmul.f32.gmra.mxu0 %v438
      %v635 = vpop.f32.mrf.mxu0
      %v636 = vadd.f32 0.0, %v635
      %637 = vmatmul.f32.gmra.mxu0 %v441
      %v638 = vpop.f32.mrf.mxu0
      %v639 = vadd.f32 0.0, %v638
      %640 = vmatmul.f32.gmra.mxu0 %v444
      %v641 = vpop.f32.mrf.mxu0
      %v642 = vadd.f32 0.0, %v641
      %643 = vmatmul.f32.gmra.mxu0 %v447
      %v644 = vpop.f32.mrf.mxu0
      %v645 = vadd.f32 0.0, %v644
      %646 = vmatmul.f32.gmra.mxu0 %v450
      %v647 = vpop.f32.mrf.mxu0
      %v648 = vadd.f32 0.0, %v647
      %649 = vmatmul.f32.gmra.mxu0 %v453
      %v650 = vpop.f32.mrf.mxu0
      %v651 = vadd.f32 0.0, %v650
      %652 = vmatmul.f32.gmra.mxu0 %v456
      %v653 = vpop.f32.mrf.mxu0
      %v654 = vadd.f32 0.0, %v653
      %655 = vmatmul.f32.gmra.mxu0 %v459
      %v656 = vpop.f32.mrf.mxu0
      %v657 = vadd.f32 0.0, %v656
      %658 = vmatmul.f32.gmra.mxu0 %v462
      %v659 = vpop.f32.mrf.mxu0
      %v660 = vadd.f32 0.0, %v659
      %661 = vdwg.mxu0
      %v662 = vld [vmem:[%s357] sm:$0xff]
      %v663 = vld [vmem:[%s357 + $0x8] sm:$0xff]
      %v665 = vsel %vm415, %v662, 0
      %v668 = vsel %vm415, %v663, 0
      %v670 = vsel %vm464, %v389, 0
      %672 = vmatpush.msra.mxu0 0.0
      %673 = vmatpush.msra.mxu0 0.0
      %674 = vmatpush.msra.mxu0 0.0
      %675 = vmatpush.msra.mxu0 0.0
      %676 = vmatpush.msra.mxu0 0.0
      %677 = vmatpush.msra.mxu0 0.0
      %678 = vmatpush.msra.mxu0 0.0
      %679 = vmatpush.msra.mxu0 0.0
      %680 = vmatpush.msra.mxu0 0.0
      %681 = vmatpush.msra.mxu0 0.0
      %682 = vmatpush.msra.mxu0 0.0
      %683 = vmatpush.msra.mxu0 0.0
      %684 = vmatpush.msra.mxu0 0.0
      %685 = vmatpush.msra.mxu0 0.0
      %686 = vmatpush.msra.mxu0 0.0
      %687 = vmatpush.msra.mxu0 %v670
      %688 = vmatmul.f32.gmra.mxu0 %v665
      %v689 = vpop.f32.mrf.mxu0
      %v690 = vadd.f32 0.0, %v689
      %691 = vmatmul.f32.gmra.mxu0 %v668
      %v692 = vpop.f32.mrf.mxu0
      %v693 = vadd.f32 0.0, %v692
      %694 = vdwg.mxu0
      %v695 = vld [vmem:[%s375] sm:$0xff]
      %v696 = vld [vmem:[%s375 + $0x8] sm:$0xff]
      %v698 = vsel %vm415, %v695, 0
      %v701 = vsel %vm415, %v696, 0
      %v703 = vsel %vm464, %v390, 0
      %705 = vmatpush.msra.mxu0 0.0
      %706 = vmatpush.msra.mxu0 0.0
      %707 = vmatpush.msra.mxu0 0.0
      %708 = vmatpush.msra.mxu0 0.0
      %709 = vmatpush.msra.mxu0 0.0
      %710 = vmatpush.msra.mxu0 0.0
      %711 = vmatpush.msra.mxu0 0.0
      %712 = vmatpush.msra.mxu0 0.0
      %713 = vmatpush.msra.mxu0 0.0
      %714 = vmatpush.msra.mxu0 0.0
      %715 = vmatpush.msra.mxu0 0.0
      %716 = vmatpush.msra.mxu0 0.0
      %717 = vmatpush.msra.mxu0 0.0
      %718 = vmatpush.msra.mxu0 0.0
      %719 = vmatpush.msra.mxu0 0.0
      %720 = vmatpush.msra.mxu0 %v703
      %721 = vmatmul.f32.gmra.mxu0 %v698
      %v722 = vpop.f32.mrf.mxu0
      %v723 = vadd.f32 0.0, %v722
      %724 = vmatmul.f32.gmra.mxu0 %v701
      %v725 = vpop.f32.mrf.mxu0
      %v726 = vadd.f32 0.0, %v725
      %727 = vdwg.mxu0
      %p728 = scmp.gt.s32.totalorder %s21, 0
      %s729 = scalar_select %p728, 1, 0
      %v730 = vstv %s729
      %vm731 = vcmp.eq.s32.totalorder %v730, 1
      %v732 = vsel %vm731, %v690, 0.0
      %v733 = vsel %vm731, %v693, 0.0
      %p734 = scmp.lt.s32.totalorder %s21, 1
      %s735 = scalar_select %p734, 1, 0
      %v736 = vstv %s735
      %vm737 = vcmp.eq.s32.totalorder %v736, 1
      %v738 = vsel %vm737, %v723, 0.0
      %v739 = vsel %vm737, %v726, 0.0
      %v740 = vadd.f32 %v552, %v732
      %v741 = vadd.f32 %v555, %v733
      %v742 = vadd.f32 %v558, %v489
      %v743 = vadd.f32 %v561, %v492
      %v744 = vadd.f32 %v564, %v495
      %v745 = vadd.f32 %v567, %v498
      %v746 = vadd.f32 %v570, %v501
      %v747 = vadd.f32 %v573, %v504
      %v748 = vadd.f32 %v576, %v507
      %v749 = vadd.f32 %v579, %v510
      %v750 = vadd.f32 %v582, %v513
      %v751 = vadd.f32 %v585, %v516
      %v752 = vadd.f32 %v588, %v519
      %v753 = vadd.f32 %v591, %v522
      %v754 = vadd.f32 %v594, %v525
      %v755 = vadd.f32 %v597, %v528
      %v756 = vadd.f32 %v740, %v621
      %v757 = vadd.f32 %v741, %v624
      %v758 = vadd.f32 %v742, %v627
      %v759 = vadd.f32 %v743, %v630
      %v760 = vadd.f32 %v744, %v633
      %v761 = vadd.f32 %v745, %v636
      %v762 = vadd.f32 %v746, %v639
      %v763 = vadd.f32 %v747, %v642
      %v764 = vadd.f32 %v748, %v645
      %v765 = vadd.f32 %v749, %v648
      %v766 = vadd.f32 %v750, %v651
      %v767 = vadd.f32 %v751, %v654
      %v768 = vadd.f32 %v752, %v657
      %v769 = vadd.f32 %v753, %v660
      %v770 = vadd.f32 %v754, %v738
      %v771 = vadd.f32 %v755, %v739
      %v772 = vrot.slane %v760, 4
      %vm773 = vcmask 1047556
      %v774 = vsel %vm773, %v772, %v756
      %v775 = vrot.slane %v756, 4
      %v776 = vsel %vm773, %v760, %v775
      %v778 = vunpack.c.l.s4 1983009808
      %v779 = vunpack.c.0.s8 %v778
      %v780 = vperm.slane %v774, %v779
      %v782 = vunpack.c.l.s4 1983009808
      %v783 = vunpack.c.0.s8 %v782
      %v784 = vperm.slane %v776, %v783
      %v785 = vrot.slane %v762, 4
      %v786 = vsel %vm773, %v785, %v758
      %v787 = vrot.slane %v758, 4
      %v788 = vsel %vm773, %v762, %v787
      %v790 = vunpack.c.l.s4 1983009808
      %v791 = vunpack.c.0.s8 %v790
      %v792 = vperm.slane %v786, %v791
      %v794 = vunpack.c.l.s4 1983009808
      %v795 = vunpack.c.0.s8 %v794
      %v796 = vperm.slane %v788, %v795
      %v797 = vrot.slane %v768, 4
      %v798 = vsel %vm773, %v797, %v764
      %v799 = vrot.slane %v764, 4
      %v800 = vsel %vm773, %v768, %v799
      %v802 = vunpack.c.l.s4 1983009808
      %v803 = vunpack.c.0.s8 %v802
      %v804 = vperm.slane %v798, %v803
      %v806 = vunpack.c.l.s4 1983009808
      %v807 = vunpack.c.0.s8 %v806
      %v808 = vperm.slane %v800, %v807
      %v809 = vrot.slane %v770, 4
      %v810 = vsel %vm773, %v809, %v766
      %v811 = vrot.slane %v766, 4
      %v812 = vsel %vm773, %v770, %v811
      %v814 = vunpack.c.l.s4 1983009808
      %v815 = vunpack.c.0.s8 %v814
      %v816 = vperm.slane %v810, %v815
      %v818 = vunpack.c.l.s4 1983009808
      %v819 = vunpack.c.0.s8 %v818
      %v820 = vperm.slane %v812, %v819
      %v821 = vrot.slane %v792, 4
      %v822 = vsel %vm773, %v821, %v780
      %v823 = vrot.slane %v780, 4
      %v824 = vsel %vm773, %v792, %v823
      %v826 = vunpack.c.l.s4 1934713408
      %v827 = vunpack.c.0.s8 %v826
      %v828 = vperm.slane %v822, %v827
      %v830 = vunpack.c.l.s4 1934713408
      %v831 = vunpack.c.0.s8 %v830
      %v832 = vperm.slane %v824, %v831
      %v833 = vrot.slane %v796, 4
      %v834 = vsel %vm773, %v833, %v784
      %v835 = vrot.slane %v784, 4
      %v836 = vsel %vm773, %v796, %v835
      %v838 = vunpack.c.l.s4 1934713408
      %v839 = vunpack.c.0.s8 %v838
      %v840 = vperm.slane %v834, %v839
      %v842 = vunpack.c.l.s4 1934713408
      %v843 = vunpack.c.0.s8 %v842
      %v844 = vperm.slane %v836, %v843
      %v845 = vrot.slane %v816, 4
      %v846 = vsel %vm773, %v845, %v804
      %v847 = vrot.slane %v804, 4
      %v848 = vsel %vm773, %v816, %v847
      %v850 = vunpack.c.l.s4 1934713408
      %v851 = vunpack.c.0.s8 %v850
      %v852 = vperm.slane %v846, %v851
      %v854 = vunpack.c.l.s4 1934713408
      %v855 = vunpack.c.0.s8 %v854
      %v856 = vperm.slane %v848, %v855
      %v857 = vrot.slane %v820, 4
      %v858 = vsel %vm773, %v857, %v808
      %v859 = vrot.slane %v808, 4
      %v860 = vsel %vm773, %v820, %v859
      %v862 = vunpack.c.l.s4 1934713408
      %v863 = vunpack.c.0.s8 %v862
      %v864 = vperm.slane %v858, %v863
      %v866 = vunpack.c.l.s4 1934713408
      %v867 = vunpack.c.0.s8 %v866
      %v868 = vperm.slane %v860, %v867
      %v869 = vrot.slane %v852, 4
      %v870 = vsel %vm773, %v869, %v828
      %v871 = vrot.slane %v828, 4
      %v872 = vsel %vm773, %v852, %v871
      %v873 = vrot.slane %v856, 4
      %v874 = vsel %vm773, %v873, %v832
      %v875 = vrot.slane %v832, 4
      %v876 = vsel %vm773, %v856, %v875
      %v877 = vrot.slane %v864, 4
      %v878 = vsel %vm773, %v877, %v840
      %v879 = vrot.slane %v840, 4
      %v880 = vsel %vm773, %v864, %v879
      %v881 = vrot.slane %v868, 4
      %v882 = vsel %vm773, %v881, %v844
      %v883 = vrot.slane %v844, 4
      %v884 = vsel %vm773, %v868, %v883
      %v885 = vrot.slane %v761, 4
      %v886 = vsel %vm773, %v885, %v757
      %v887 = vrot.slane %v757, 4
      %v888 = vsel %vm773, %v761, %v887
      %v890 = vunpack.c.l.s4 1983009808
      %v891 = vunpack.c.0.s8 %v890
      %v892 = vperm.slane %v886, %v891
      %v894 = vunpack.c.l.s4 1983009808
      %v895 = vunpack.c.0.s8 %v894
      %v896 = vperm.slane %v888, %v895
      %v897 = vrot.slane %v763, 4
      %v898 = vsel %vm773, %v897, %v759
      %v899 = vrot.slane %v759, 4
      %v900 = vsel %vm773, %v763, %v899
      %v902 = vunpack.c.l.s4 1983009808
      %v903 = vunpack.c.0.s8 %v902
      %v904 = vperm.slane %v898, %v903
      %v906 = vunpack.c.l.s4 1983009808
      %v907 = vunpack.c.0.s8 %v906
      %v908 = vperm.slane %v900, %v907
      %v909 = vrot.slane %v769, 4
      %v910 = vsel %vm773, %v909, %v765
      %v911 = vrot.slane %v765, 4
      %v912 = vsel %vm773, %v769, %v911
      %v914 = vunpack.c.l.s4 1983009808
      %v915 = vunpack.c.0.s8 %v914
      %v916 = vperm.slane %v910, %v915
      %v918 = vunpack.c.l.s4 1983009808
      %v919 = vunpack.c.0.s8 %v918
      %v920 = vperm.slane %v912, %v919
      %v921 = vrot.slane %v771, 4
      %v922 = vsel %vm773, %v921, %v767
      %v923 = vrot.slane %v767, 4
      %v924 = vsel %vm773, %v771, %v923
      %v926 = vunpack.c.l.s4 1983009808
      %v927 = vunpack.c.0.s8 %v926
      %v928 = vperm.slane %v922, %v927
      %v930 = vunpack.c.l.s4 1983009808
      %v931 = vunpack.c.0.s8 %v930
      %v932 = vperm.slane %v924, %v931
      %v933 = vrot.slane %v904, 4
      %v934 = vsel %vm773, %v933, %v892
      %v935 = vrot.slane %v892, 4
      %v936 = vsel %vm773, %v904, %v935
      %v938 = vunpack.c.l.s4 1934713408
      %v939 = vunpack.c.0.s8 %v938
      %v940 = vperm.slane %v934, %v939
      %v942 = vunpack.c.l.s4 1934713408
      %v943 = vunpack.c.0.s8 %v942
      %v944 = vperm.slane %v936, %v943
      %v945 = vrot.slane %v908, 4
      %v946 = vsel %vm773, %v945, %v896
      %v947 = vrot.slane %v896, 4
      %v948 = vsel %vm773, %v908, %v947
      %v950 = vunpack.c.l.s4 1934713408
      %v951 = vunpack.c.0.s8 %v950
      %v952 = vperm.slane %v946, %v951
      %v954 = vunpack.c.l.s4 1934713408
      %v955 = vunpack.c.0.s8 %v954
      %v956 = vperm.slane %v948, %v955
      %v957 = vrot.slane %v928, 4
      %v958 = vsel %vm773, %v957, %v916
      %v959 = vrot.slane %v916, 4
      %v960 = vsel %vm773, %v928, %v959
      %v962 = vunpack.c.l.s4 1934713408
      %v963 = vunpack.c.0.s8 %v962
      %v964 = vperm.slane %v958, %v963
      %v966 = vunpack.c.l.s4 1934713408
      %v967 = vunpack.c.0.s8 %v966
      %v968 = vperm.slane %v960, %v967
      %v969 = vrot.slane %v932, 4
      %v970 = vsel %vm773, %v969, %v920
      %v971 = vrot.slane %v920, 4
      %v972 = vsel %vm773, %v932, %v971
      %v974 = vunpack.c.l.s4 1934713408
      %v975 = vunpack.c.0.s8 %v974
      %v976 = vperm.slane %v970, %v975
      %v978 = vunpack.c.l.s4 1934713408
      %v979 = vunpack.c.0.s8 %v978
      %v980 = vperm.slane %v972, %v979
      %v981 = vrot.slane %v964, 4
      %v982 = vsel %vm773, %v981, %v940
      %v983 = vrot.slane %v940, 4
      %v984 = vsel %vm773, %v964, %v983
      %v985 = vrot.slane %v968, 4
      %v986 = vsel %vm773, %v985, %v944
      %v987 = vrot.slane %v944, 4
      %v988 = vsel %vm773, %v968, %v987
      %v989 = vrot.slane %v976, 4
      %v990 = vsel %vm773, %v989, %v952
      %v991 = vrot.slane %v952, 4
      %v992 = vsel %vm773, %v976, %v991
      %v993 = vrot.slane %v980, 4
      %v994 = vsel %vm773, %v993, %v956
      %v995 = vrot.slane %v956, 4
      %v996 = vsel %vm773, %v980, %v995
      %998 = vrot.lane.b32.xlu0 %v872, 4
      %v999 = vpop.permute.xlu0 %998
      %1002 = vrot.lane.b32.xlu0 %v874, 8
      %v1003 = vpop.permute.xlu0 %1002
      %1006 = vrot.lane.b32.xlu0 %v876, 12
      %v1007 = vpop.permute.xlu0 %1006
      %1010 = vrot.lane.b32.xlu0 %v878, 16
      %v1011 = vpop.permute.xlu0 %1010
      %1014 = vrot.lane.b32.xlu0 %v880, 20
      %v1015 = vpop.permute.xlu0 %1014
      %1018 = vrot.lane.b32.xlu0 %v882, 24
      %v1019 = vpop.permute.xlu0 %1018
      %1022 = vrot.lane.b32.xlu0 %v884, 28
      %v1023 = vpop.permute.xlu0 %1022
      %1026 = vrot.lane.b32.xlu0 %v982, 32
      %v1027 = vpop.permute.xlu0 %1026
      %1030 = vrot.lane.b32.xlu0 %v984, 36
      %v1031 = vpop.permute.xlu0 %1030
      %1034 = vrot.lane.b32.xlu0 %v986, 40
      %v1035 = vpop.permute.xlu0 %1034
      %1038 = vrot.lane.b32.xlu0 %v988, 44
      %v1039 = vpop.permute.xlu0 %1038
      %1042 = vrot.lane.b32.xlu0 %v990, 48
      %v1043 = vpop.permute.xlu0 %1042
      %1046 = vrot.lane.b32.xlu0 %v992, 52
      %v1047 = vpop.permute.xlu0 %1046
      %1050 = vrot.lane.b32.xlu0 %v994, 56
      %v1051 = vpop.permute.xlu0 %1050
      %1054 = vrot.lane.b32.xlu0 %v996, 60
      %v1055 = vpop.permute.xlu0 %1054
      %v1057 = vsel %vm415, %v870, %v999
      %vm1058 = vcmask 64512
      %v1059 = vsel %vm1058, %v1057, %v1003
      %vm1060 = vcmask 97280
      %v1061 = vsel %vm1060, %v1059, %v1007
      %vm1062 = vcmask 130048
      %v1063 = vsel %vm1062, %v1061, %v1011
      %vm1064 = vcmask 162816
      %v1065 = vsel %vm1064, %v1063, %v1015
      %vm1066 = vcmask 195584
      %v1067 = vsel %vm1066, %v1065, %v1019
      %vm1068 = vcmask 228352
      %v1069 = vsel %vm1068, %v1067, %v1023
      %vm1070 = vcmask 261120
      %v1071 = vsel %vm1070, %v1069, %v1027
      %vm1072 = vcmask 293888
      %v1073 = vsel %vm1072, %v1071, %v1031
      %vm1074 = vcmask 326656
      %v1075 = vsel %vm1074, %v1073, %v1035
      %vm1076 = vcmask 359424
      %v1077 = vsel %vm1076, %v1075, %v1039
      %vm1078 = vcmask 392192
      %v1079 = vsel %vm1078, %v1077, %v1043
      %vm1080 = vcmask 424960
      %v1081 = vsel %vm1080, %v1079, %v1047
      %vm1082 = vcmask 457728
      %v1083 = vsel %vm1082, %v1081, %v1051
      %vm1084 = vcmask 490496
      %v1085 = vsel %vm1084, %v1083, %v1055
      %1102 = vrot.lane.b32.xlu0 %v756, 124
      %v1103 = vpop.permute.xlu0 %1102
      %1104 = vrot.lane.b32.xlu0 %v757, 124
      %v1105 = vpop.permute.xlu0 %1104
      %1106 = vrot.lane.b32.xlu0 %v758, 124
      %v1107 = vpop.permute.xlu0 %1106
      %1108 = vrot.lane.b32.xlu0 %v759, 124
      %v1109 = vpop.permute.xlu0 %1108
      %1110 = vrot.lane.b32.xlu0 %v760, 124
      %v1111 = vpop.permute.xlu0 %1110
      %1112 = vrot.lane.b32.xlu0 %v761, 124
      %v1113 = vpop.permute.xlu0 %1112
      %1114 = vrot.lane.b32.xlu0 %v762, 124
      %v1115 = vpop.permute.xlu0 %1114
      %1116 = vrot.lane.b32.xlu0 %v763, 124
      %v1117 = vpop.permute.xlu0 %1116
      %1118 = vrot.lane.b32.xlu0 %v764, 124
      %v1119 = vpop.permute.xlu0 %1118
      %1120 = vrot.lane.b32.xlu0 %v765, 124
      %v1121 = vpop.permute.xlu0 %1120
      %1122 = vrot.lane.b32.xlu0 %v766, 124
      %v1123 = vpop.permute.xlu0 %1122
      %1124 = vrot.lane.b32.xlu0 %v767, 124
      %v1125 = vpop.permute.xlu0 %1124
      %1126 = vrot.lane.b32.xlu0 %v768, 124
      %v1127 = vpop.permute.xlu0 %1126
      %1128 = vrot.lane.b32.xlu0 %v769, 124
      %v1129 = vpop.permute.xlu0 %1128
      %1130 = vrot.lane.b32.xlu0 %v770, 124
      %v1131 = vpop.permute.xlu0 %1130
      %1132 = vrot.lane.b32.xlu0 %v771, 124
      %v1133 = vpop.permute.xlu0 %1132
      %v1150 = vrot.slane %v1111, 4
      %v1151 = vsel %vm773, %v1150, %v1103
      %v1152 = vrot.slane %v1103, 4
      %v1153 = vsel %vm773, %v1111, %v1152
      %v1155 = vunpack.c.l.s4 1983009808
      %v1156 = vunpack.c.0.s8 %v1155
      %v1157 = vperm.slane %v1151, %v1156
      %v1159 = vunpack.c.l.s4 1983009808
      %v1160 = vunpack.c.0.s8 %v1159
      %v1161 = vperm.slane %v1153, %v1160
      %v1162 = vrot.slane %v1115, 4
      %v1163 = vsel %vm773, %v1162, %v1107
      %v1164 = vrot.slane %v1107, 4
      %v1165 = vsel %vm773, %v1115, %v1164
      %v1167 = vunpack.c.l.s4 1983009808
      %v1168 = vunpack.c.0.s8 %v1167
      %v1169 = vperm.slane %v1163, %v1168
      %v1171 = vunpack.c.l.s4 1983009808
      %v1172 = vunpack.c.0.s8 %v1171
      %v1173 = vperm.slane %v1165, %v1172
      %v1174 = vrot.slane %v1127, 4
      %v1175 = vsel %vm773, %v1174, %v1119
      %v1176 = vrot.slane %v1119, 4
      %v1177 = vsel %vm773, %v1127, %v1176
      %v1179 = vunpack.c.l.s4 1983009808
      %v1180 = vunpack.c.0.s8 %v1179
      %v1181 = vperm.slane %v1175, %v1180
      %v1183 = vunpack.c.l.s4 1983009808
      %v1184 = vunpack.c.0.s8 %v1183
      %v1185 = vperm.slane %v1177, %v1184
      %v1186 = vrot.slane %v1131, 4
      %v1187 = vsel %vm773, %v1186, %v1123
      %v1188 = vrot.slane %v1123, 4
      %v1189 = vsel %vm773, %v1131, %v1188
      %v1191 = vunpack.c.l.s4 1983009808
      %v1192 = vunpack.c.0.s8 %v1191
      %v1193 = vperm.slane %v1187, %v1192
      %v1195 = vunpack.c.l.s4 1983009808
      %v1196 = vunpack.c.0.s8 %v1195
      %v1197 = vperm.slane %v1189, %v1196
      %v1198 = vrot.slane %v1169, 4
      %v1199 = vsel %vm773, %v1198, %v1157
      %v1200 = vrot.slane %v1157, 4
      %v1201 = vsel %vm773, %v1169, %v1200
      %v1203 = vunpack.c.l.s4 1934713408
      %v1204 = vunpack.c.0.s8 %v1203
      %v1205 = vperm.slane %v1199, %v1204
      %v1207 = vunpack.c.l.s4 1934713408
      %v1208 = vunpack.c.0.s8 %v1207
      %v1209 = vperm.slane %v1201, %v1208
      %v1210 = vrot.slane %v1173, 4
      %v1211 = vsel %vm773, %v1210, %v1161
      %v1212 = vrot.slane %v1161, 4
      %v1213 = vsel %vm773, %v1173, %v1212
      %v1215 = vunpack.c.l.s4 1934713408
      %v1216 = vunpack.c.0.s8 %v1215
      %v1217 = vperm.slane %v1211, %v1216
      %v1219 = vunpack.c.l.s4 1934713408
      %v1220 = vunpack.c.0.s8 %v1219
      %v1221 = vperm.slane %v1213, %v1220
      %v1222 = vrot.slane %v1193, 4
      %v1223 = vsel %vm773, %v1222, %v1181
      %v1224 = vrot.slane %v1181, 4
      %v1225 = vsel %vm773, %v1193, %v1224
      %v1227 = vunpack.c.l.s4 1934713408
      %v1228 = vunpack.c.0.s8 %v1227
      %v1229 = vperm.slane %v1223, %v1228
      %v1231 = vunpack.c.l.s4 1934713408
      %v1232 = vunpack.c.0.s8 %v1231
      %v1233 = vperm.slane %v1225, %v1232
      %v1234 = vrot.slane %v1197, 4
      %v1235 = vsel %vm773, %v1234, %v1185
      %v1236 = vrot.slane %v1185, 4
      %v1237 = vsel %vm773, %v1197, %v1236
      %v1239 = vunpack.c.l.s4 1934713408
      %v1240 = vunpack.c.0.s8 %v1239
      %v1241 = vperm.slane %v1235, %v1240
      %v1243 = vunpack.c.l.s4 1934713408
      %v1244 = vunpack.c.0.s8 %v1243
      %v1245 = vperm.slane %v1237, %v1244
      %v1246 = vrot.slane %v1229, 4
      %v1247 = vsel %vm773, %v1246, %v1205
      %v1248 = vrot.slane %v1205, 4
      %v1249 = vsel %vm773, %v1229, %v1248
      %v1250 = vrot.slane %v1233, 4
      %v1251 = vsel %vm773, %v1250, %v1209
      %v1252 = vrot.slane %v1209, 4
      %v1253 = vsel %vm773, %v1233, %v1252
      %v1254 = vrot.slane %v1241, 4
      %v1255 = vsel %vm773, %v1254, %v1217
      %v1256 = vrot.slane %v1217, 4
      %v1257 = vsel %vm773, %v1241, %v1256
      %v1258 = vrot.slane %v1245, 4
      %v1259 = vsel %vm773, %v1258, %v1221
      %v1260 = vrot.slane %v1221, 4
      %v1261 = vsel %vm773, %v1245, %v1260
      %v1262 = vrot.slane %v1113, 4
      %v1263 = vsel %vm773, %v1262, %v1105
      %v1264 = vrot.slane %v1105, 4
      %v1265 = vsel %vm773, %v1113, %v1264
      %v1267 = vunpack.c.l.s4 1983009808
      %v1268 = vunpack.c.0.s8 %v1267
      %v1269 = vperm.slane %v1263, %v1268
      %v1271 = vunpack.c.l.s4 1983009808
      %v1272 = vunpack.c.0.s8 %v1271
      %v1273 = vperm.slane %v1265, %v1272
      %v1274 = vrot.slane %v1117, 4
      %v1275 = vsel %vm773, %v1274, %v1109
      %v1276 = vrot.slane %v1109, 4
      %v1277 = vsel %vm773, %v1117, %v1276
      %v1279 = vunpack.c.l.s4 1983009808
      %v1280 = vunpack.c.0.s8 %v1279
      %v1281 = vperm.slane %v1275, %v1280
      %v1283 = vunpack.c.l.s4 1983009808
      %v1284 = vunpack.c.0.s8 %v1283
      %v1285 = vperm.slane %v1277, %v1284
      %v1286 = vrot.slane %v1129, 4
      %v1287 = vsel %vm773, %v1286, %v1121
      %v1288 = vrot.slane %v1121, 4
      %v1289 = vsel %vm773, %v1129, %v1288
      %v1291 = vunpack.c.l.s4 1983009808
      %v1292 = vunpack.c.0.s8 %v1291
      %v1293 = vperm.slane %v1287, %v1292
      %v1295 = vunpack.c.l.s4 1983009808
      %v1296 = vunpack.c.0.s8 %v1295
      %v1297 = vperm.slane %v1289, %v1296
      %v1298 = vrot.slane %v1133, 4
      %v1299 = vsel %vm773, %v1298, %v1125
      %v1300 = vrot.slane %v1125, 4
      %v1301 = vsel %vm773, %v1133, %v1300
      %v1303 = vunpack.c.l.s4 1983009808
      %v1304 = vunpack.c.0.s8 %v1303
      %v1305 = vperm.slane %v1299, %v1304
      %v1307 = vunpack.c.l.s4 1983009808
      %v1308 = vunpack.c.0.s8 %v1307
      %v1309 = vperm.slane %v1301, %v1308
      %v1310 = vrot.slane %v1281, 4
      %v1311 = vsel %vm773, %v1310, %v1269
      %v1312 = vrot.slane %v1269, 4
      %v1313 = vsel %vm773, %v1281, %v1312
      %v1315 = vunpack.c.l.s4 1934713408
      %v1316 = vunpack.c.0.s8 %v1315
      %v1317 = vperm.slane %v1311, %v1316
      %v1319 = vunpack.c.l.s4 1934713408
      %v1320 = vunpack.c.0.s8 %v1319
      %v1321 = vperm.slane %v1313, %v1320
      %v1322 = vrot.slane %v1285, 4
      %v1323 = vsel %vm773, %v1322, %v1273
      %v1324 = vrot.slane %v1273, 4
      %v1325 = vsel %vm773, %v1285, %v1324
      %v1327 = vunpack.c.l.s4 1934713408
      %v1328 = vunpack.c.0.s8 %v1327
      %v1329 = vperm.slane %v1323, %v1328
      %v1331 = vunpack.c.l.s4 1934713408
      %v1332 = vunpack.c.0.s8 %v1331
      %v1333 = vperm.slane %v1325, %v1332
      %v1334 = vrot.slane %v1305, 4
      %v1335 = vsel %vm773, %v1334, %v1293
      %v1336 = vrot.slane %v1293, 4
      %v1337 = vsel %vm773, %v1305, %v1336
      %v1339 = vunpack.c.l.s4 1934713408
      %v1340 = vunpack.c.0.s8 %v1339
      %v1341 = vperm.slane %v1335, %v1340
      %v1343 = vunpack.c.l.s4 1934713408
      %v1344 = vunpack.c.0.s8 %v1343
      %v1345 = vperm.slane %v1337, %v1344
      %v1346 = vrot.slane %v1309, 4
      %v1347 = vsel %vm773, %v1346, %v1297
      %v1348 = vrot.slane %v1297, 4
      %v1349 = vsel %vm773, %v1309, %v1348
      %v1351 = vunpack.c.l.s4 1934713408
      %v1352 = vunpack.c.0.s8 %v1351
      %v1353 = vperm.slane %v1347, %v1352
      %v1355 = vunpack.c.l.s4 1934713408
      %v1356 = vunpack.c.0.s8 %v1355
      %v1357 = vperm.slane %v1349, %v1356
      %v1358 = vrot.slane %v1341, 4
      %v1359 = vsel %vm773, %v1358, %v1317
      %v1360 = vrot.slane %v1317, 4
      %v1361 = vsel %vm773, %v1341, %v1360
      %v1362 = vrot.slane %v1345, 4
      %v1363 = vsel %vm773, %v1362, %v1321
      %v1364 = vrot.slane %v1321, 4
      %v1365 = vsel %vm773, %v1345, %v1364
      %v1366 = vrot.slane %v1353, 4
      %v1367 = vsel %vm773, %v1366, %v1329
      %v1368 = vrot.slane %v1329, 4
      %v1369 = vsel %vm773, %v1353, %v1368
      %v1370 = vrot.slane %v1357, 4
      %v1371 = vsel %vm773, %v1370, %v1333
      %v1372 = vrot.slane %v1333, 4
      %v1373 = vsel %vm773, %v1357, %v1372
      %1375 = vrot.lane.b32.xlu0 %v1249, 4
      %v1376 = vpop.permute.xlu0 %1375
      %1379 = vrot.lane.b32.xlu0 %v1251, 8
      %v1380 = vpop.permute.xlu0 %1379
      %1383 = vrot.lane.b32.xlu0 %v1253, 12
      %v1384 = vpop.permute.xlu0 %1383
      %1387 = vrot.lane.b32.xlu0 %v1255, 16
      %v1388 = vpop.permute.xlu0 %1387
      %1391 = vrot.lane.b32.xlu0 %v1257, 20
      %v1392 = vpop.permute.xlu0 %1391
      %1395 = vrot.lane.b32.xlu0 %v1259, 24
      %v1396 = vpop.permute.xlu0 %1395
      %1399 = vrot.lane.b32.xlu0 %v1261, 28
      %v1400 = vpop.permute.xlu0 %1399
      %1403 = vrot.lane.b32.xlu0 %v1359, 32
      %v1404 = vpop.permute.xlu0 %1403
      %1407 = vrot.lane.b32.xlu0 %v1361, 36
      %v1408 = vpop.permute.xlu0 %1407
      %1411 = vrot.lane.b32.xlu0 %v1363, 40
      %v1412 = vpop.permute.xlu0 %1411
      %1415 = vrot.lane.b32.xlu0 %v1365, 44
      %v1416 = vpop.permute.xlu0 %1415
      %1419 = vrot.lane.b32.xlu0 %v1367, 48
      %v1420 = vpop.permute.xlu0 %1419
      %1423 = vrot.lane.b32.xlu0 %v1369, 52
      %v1424 = vpop.permute.xlu0 %1423
      %1427 = vrot.lane.b32.xlu0 %v1371, 56
      %v1428 = vpop.permute.xlu0 %1427
      %1431 = vrot.lane.b32.xlu0 %v1373, 60
      %v1432 = vpop.permute.xlu0 %1431
      %v1434 = vsel %vm415, %v1247, %v1376
      %v1435 = vsel %vm1058, %v1434, %v1380
      %v1436 = vsel %vm1060, %v1435, %v1384
      %v1437 = vsel %vm1062, %v1436, %v1388
      %v1438 = vsel %vm1064, %v1437, %v1392
      %v1439 = vsel %vm1066, %v1438, %v1396
      %v1440 = vsel %vm1068, %v1439, %v1400
      %v1441 = vsel %vm1070, %v1440, %v1404
      %v1442 = vsel %vm1072, %v1441, %v1408
      %v1443 = vsel %vm1074, %v1442, %v1412
      %v1444 = vsel %vm1076, %v1443, %v1416
      %v1445 = vsel %vm1078, %v1444, %v1420
      %v1446 = vsel %vm1080, %v1445, %v1424
      %v1447 = vsel %vm1082, %v1446, %v1428
      %v1448 = vsel %vm1084, %v1447, %v1432
      %1449 = vrot.lane.b32.xlu0 %v756, 120
      %v1450 = vpop.permute.xlu0 %1449
      %1451 = vrot.lane.b32.xlu0 %v757, 120
      %v1452 = vpop.permute.xlu0 %1451
      %1453 = vrot.lane.b32.xlu0 %v758, 120
      %v1454 = vpop.permute.xlu0 %1453
      %1455 = vrot.lane.b32.xlu0 %v759, 120
      %v1456 = vpop.permute.xlu0 %1455
      %1457 = vrot.lane.b32.xlu0 %v760, 120
      %v1458 = vpop.permute.xlu0 %1457
      %1459 = vrot.lane.b32.xlu0 %v761, 120
      %v1460 = vpop.permute.xlu0 %1459
      %1461 = vrot.lane.b32.xlu0 %v762, 120
      %v1462 = vpop.permute.xlu0 %1461
      %1463 = vrot.lane.b32.xlu0 %v763, 120
      %v1464 = vpop.permute.xlu0 %1463
      %1465 = vrot.lane.b32.xlu0 %v764, 120
      %v1466 = vpop.permute.xlu0 %1465
      %1467 = vrot.lane.b32.xlu0 %v765, 120
      %v1468 = vpop.permute.xlu0 %1467
      %1469 = vrot.lane.b32.xlu0 %v766, 120
      %v1470 = vpop.permute.xlu0 %1469
      %1471 = vrot.lane.b32.xlu0 %v767, 120
      %v1472 = vpop.permute.xlu0 %1471
      %1473 = vrot.lane.b32.xlu0 %v768, 120
      %v1474 = vpop.permute.xlu0 %1473
      %1475 = vrot.lane.b32.xlu0 %v769, 120
      %v1476 = vpop.permute.xlu0 %1475
      %1477 = vrot.lane.b32.xlu0 %v770, 120
      %v1478 = vpop.permute.xlu0 %1477
      %1479 = vrot.lane.b32.xlu0 %v771, 120
      %v1480 = vpop.permute.xlu0 %1479
      %v1497 = vrot.slane %v1458, 4
      %v1498 = vsel %vm773, %v1497, %v1450
      %v1499 = vrot.slane %v1450, 4
      %v1500 = vsel %vm773, %v1458, %v1499
      %v1502 = vunpack.c.l.s4 1983009808
      %v1503 = vunpack.c.0.s8 %v1502
      %v1504 = vperm.slane %v1498, %v1503
      %v1506 = vunpack.c.l.s4 1983009808
      %v1507 = vunpack.c.0.s8 %v1506
      %v1508 = vperm.slane %v1500, %v1507
      %v1509 = vrot.slane %v1462, 4
      %v1510 = vsel %vm773, %v1509, %v1454
      %v1511 = vrot.slane %v1454, 4
      %v1512 = vsel %vm773, %v1462, %v1511
      %v1514 = vunpack.c.l.s4 1983009808
      %v1515 = vunpack.c.0.s8 %v1514
      %v1516 = vperm.slane %v1510, %v1515
      %v1518 = vunpack.c.l.s4 1983009808
      %v1519 = vunpack.c.0.s8 %v1518
      %v1520 = vperm.slane %v1512, %v1519
      %v1521 = vrot.slane %v1474, 4
      %v1522 = vsel %vm773, %v1521, %v1466
      %v1523 = vrot.slane %v1466, 4
      %v1524 = vsel %vm773, %v1474, %v1523
      %v1526 = vunpack.c.l.s4 1983009808
      %v1527 = vunpack.c.0.s8 %v1526
      %v1528 = vperm.slane %v1522, %v1527
      %v1530 = vunpack.c.l.s4 1983009808
      %v1531 = vunpack.c.0.s8 %v1530
      %v1532 = vperm.slane %v1524, %v1531
      %v1533 = vrot.slane %v1478, 4
      %v1534 = vsel %vm773, %v1533, %v1470
      %v1535 = vrot.slane %v1470, 4
      %v1536 = vsel %vm773, %v1478, %v1535
      %v1538 = vunpack.c.l.s4 1983009808
      %v1539 = vunpack.c.0.s8 %v1538
      %v1540 = vperm.slane %v1534, %v1539
      %v1542 = vunpack.c.l.s4 1983009808
      %v1543 = vunpack.c.0.s8 %v1542
      %v1544 = vperm.slane %v1536, %v1543
      %v1545 = vrot.slane %v1516, 4
      %v1546 = vsel %vm773, %v1545, %v1504
      %v1547 = vrot.slane %v1504, 4
      %v1548 = vsel %vm773, %v1516, %v1547
      %v1550 = vunpack.c.l.s4 1934713408
      %v1551 = vunpack.c.0.s8 %v1550
      %v1552 = vperm.slane %v1546, %v1551
      %v1554 = vunpack.c.l.s4 1934713408
      %v1555 = vunpack.c.0.s8 %v1554
      %v1556 = vperm.slane %v1548, %v1555
      %v1557 = vrot.slane %v1520, 4
      %v1558 = vsel %vm773, %v1557, %v1508
      %v1559 = vrot.slane %v1508, 4
      %v1560 = vsel %vm773, %v1520, %v1559
      %v1562 = vunpack.c.l.s4 1934713408
      %v1563 = vunpack.c.0.s8 %v1562
      %v1564 = vperm.slane %v1558, %v1563
      %v1566 = vunpack.c.l.s4 1934713408
      %v1567 = vunpack.c.0.s8 %v1566
      %v1568 = vperm.slane %v1560, %v1567
      %v1569 = vrot.slane %v1540, 4
      %v1570 = vsel %vm773, %v1569, %v1528
      %v1571 = vrot.slane %v1528, 4
      %v1572 = vsel %vm773, %v1540, %v1571
      %v1574 = vunpack.c.l.s4 1934713408
      %v1575 = vunpack.c.0.s8 %v1574
      %v1576 = vperm.slane %v1570, %v1575
      %v1578 = vunpack.c.l.s4 1934713408
      %v1579 = vunpack.c.0.s8 %v1578
      %v1580 = vperm.slane %v1572, %v1579
      %v1581 = vrot.slane %v1544, 4
      %v1582 = vsel %vm773, %v1581, %v1532
      %v1583 = vrot.slane %v1532, 4
      %v1584 = vsel %vm773, %v1544, %v1583
      %v1586 = vunpack.c.l.s4 1934713408
      %v1587 = vunpack.c.0.s8 %v1586
      %v1588 = vperm.slane %v1582, %v1587
      %v1590 = vunpack.c.l.s4 1934713408
      %v1591 = vunpack.c.0.s8 %v1590
      %v1592 = vperm.slane %v1584, %v1591
      %v1593 = vrot.slane %v1576, 4
      %v1594 = vsel %vm773, %v1593, %v1552
      %v1595 = vrot.slane %v1552, 4
      %v1596 = vsel %vm773, %v1576, %v1595
      %v1597 = vrot.slane %v1580, 4
      %v1598 = vsel %vm773, %v1597, %v1556
      %v1599 = vrot.slane %v1556, 4
      %v1600 = vsel %vm773, %v1580, %v1599
      %v1601 = vrot.slane %v1588, 4
      %v1602 = vsel %vm773, %v1601, %v1564
      %v1603 = vrot.slane %v1564, 4
      %v1604 = vsel %vm773, %v1588, %v1603
      %v1605 = vrot.slane %v1592, 4
      %v1606 = vsel %vm773, %v1605, %v1568
      %v1607 = vrot.slane %v1568, 4
      %v1608 = vsel %vm773, %v1592, %v1607
      %v1609 = vrot.slane %v1460, 4
      %v1610 = vsel %vm773, %v1609, %v1452
      %v1611 = vrot.slane %v1452, 4
      %v1612 = vsel %vm773, %v1460, %v1611
      %v1614 = vunpack.c.l.s4 1983009808
      %v1615 = vunpack.c.0.s8 %v1614
      %v1616 = vperm.slane %v1610, %v1615
      %v1618 = vunpack.c.l.s4 1983009808
      %v1619 = vunpack.c.0.s8 %v1618
      %v1620 = vperm.slane %v1612, %v1619
      %v1621 = vrot.slane %v1464, 4
      %v1622 = vsel %vm773, %v1621, %v1456
      %v1623 = vrot.slane %v1456, 4
      %v1624 = vsel %vm773, %v1464, %v1623
      %v1626 = vunpack.c.l.s4 1983009808
      %v1627 = vunpack.c.0.s8 %v1626
      %v1628 = vperm.slane %v1622, %v1627
      %v1630 = vunpack.c.l.s4 1983009808
      %v1631 = vunpack.c.0.s8 %v1630
      %v1632 = vperm.slane %v1624, %v1631
      %v1633 = vrot.slane %v1476, 4
      %v1634 = vsel %vm773, %v1633, %v1468
      %v1635 = vrot.slane %v1468, 4
      %v1636 = vsel %vm773, %v1476, %v1635
      %v1638 = vunpack.c.l.s4 1983009808
      %v1639 = vunpack.c.0.s8 %v1638
      %v1640 = vperm.slane %v1634, %v1639
      %v1642 = vunpack.c.l.s4 1983009808
      %v1643 = vunpack.c.0.s8 %v1642
      %v1644 = vperm.slane %v1636, %v1643
      %v1645 = vrot.slane %v1480, 4
      %v1646 = vsel %vm773, %v1645, %v1472
      %v1647 = vrot.slane %v1472, 4
      %v1648 = vsel %vm773, %v1480, %v1647
      %v1650 = vunpack.c.l.s4 1983009808
      %v1651 = vunpack.c.0.s8 %v1650
      %v1652 = vperm.slane %v1646, %v1651
      %v1654 = vunpack.c.l.s4 1983009808
      %v1655 = vunpack.c.0.s8 %v1654
      %v1656 = vperm.slane %v1648, %v1655
      %v1657 = vrot.slane %v1628, 4
      %v1658 = vsel %vm773, %v1657, %v1616
      %v1659 = vrot.slane %v1616, 4
      %v1660 = vsel %vm773, %v1628, %v1659
      %v1662 = vunpack.c.l.s4 1934713408
      %v1663 = vunpack.c.0.s8 %v1662
      %v1664 = vperm.slane %v1658, %v1663
      %v1666 = vunpack.c.l.s4 1934713408
      %v1667 = vunpack.c.0.s8 %v1666
      %v1668 = vperm.slane %v1660, %v1667
      %v1669 = vrot.slane %v1632, 4
      %v1670 = vsel %vm773, %v1669, %v1620
      %v1671 = vrot.slane %v1620, 4
      %v1672 = vsel %vm773, %v1632, %v1671
      %v1674 = vunpack.c.l.s4 1934713408
      %v1675 = vunpack.c.0.s8 %v1674
      %v1676 = vperm.slane %v1670, %v1675
      %v1678 = vunpack.c.l.s4 1934713408
      %v1679 = vunpack.c.0.s8 %v1678
      %v1680 = vperm.slane %v1672, %v1679
      %v1681 = vrot.slane %v1652, 4
      %v1682 = vsel %vm773, %v1681, %v1640
      %v1683 = vrot.slane %v1640, 4
      %v1684 = vsel %vm773, %v1652, %v1683
      %v1686 = vunpack.c.l.s4 1934713408
      %v1687 = vunpack.c.0.s8 %v1686
      %v1688 = vperm.slane %v1682, %v1687
      %v1690 = vunpack.c.l.s4 1934713408
      %v1691 = vunpack.c.0.s8 %v1690
      %v1692 = vperm.slane %v1684, %v1691
      %v1693 = vrot.slane %v1656, 4
      %v1694 = vsel %vm773, %v1693, %v1644
      %v1695 = vrot.slane %v1644, 4
      %v1696 = vsel %vm773, %v1656, %v1695
      %v1698 = vunpack.c.l.s4 1934713408
      %v1699 = vunpack.c.0.s8 %v1698
      %v1700 = vperm.slane %v1694, %v1699
      %v1702 = vunpack.c.l.s4 1934713408
      %v1703 = vunpack.c.0.s8 %v1702
      %v1704 = vperm.slane %v1696, %v1703
      %v1705 = vrot.slane %v1688, 4
      %v1706 = vsel %vm773, %v1705, %v1664
      %v1707 = vrot.slane %v1664, 4
      %v1708 = vsel %vm773, %v1688, %v1707
      %v1709 = vrot.slane %v1692, 4
      %v1710 = vsel %vm773, %v1709, %v1668
      %v1711 = vrot.slane %v1668, 4
      %v1712 = vsel %vm773, %v1692, %v1711
      %v1713 = vrot.slane %v1700, 4
      %v1714 = vsel %vm773, %v1713, %v1676
      %v1715 = vrot.slane %v1676, 4
      %v1716 = vsel %vm773, %v1700, %v1715
      %v1717 = vrot.slane %v1704, 4
      %v1718 = vsel %vm773, %v1717, %v1680
      %v1719 = vrot.slane %v1680, 4
      %v1720 = vsel %vm773, %v1704, %v1719
      %1722 = vrot.lane.b32.xlu0 %v1596, 4
      %v1723 = vpop.permute.xlu0 %1722
      %1726 = vrot.lane.b32.xlu0 %v1598, 8
      %v1727 = vpop.permute.xlu0 %1726
      %1730 = vrot.lane.b32.xlu0 %v1600, 12
      %v1731 = vpop.permute.xlu0 %1730
      %1734 = vrot.lane.b32.xlu0 %v1602, 16
      %v1735 = vpop.permute.xlu0 %1734
      %1738 = vrot.lane.b32.xlu0 %v1604, 20
      %v1739 = vpop.permute.xlu0 %1738
      %1742 = vrot.lane.b32.xlu0 %v1606, 24
      %v1743 = vpop.permute.xlu0 %1742
      %1746 = vrot.lane.b32.xlu0 %v1608, 28
      %v1747 = vpop.permute.xlu0 %1746
      %1750 = vrot.lane.b32.xlu0 %v1706, 32
      %v1751 = vpop.permute.xlu0 %1750
      %1754 = vrot.lane.b32.xlu0 %v1708, 36
      %v1755 = vpop.permute.xlu0 %1754
      %1758 = vrot.lane.b32.xlu0 %v1710, 40
      %v1759 = vpop.permute.xlu0 %1758
      %1762 = vrot.lane.b32.xlu0 %v1712, 44
      %v1763 = vpop.permute.xlu0 %1762
      %1766 = vrot.lane.b32.xlu0 %v1714, 48
      %v1767 = vpop.permute.xlu0 %1766
      %1770 = vrot.lane.b32.xlu0 %v1716, 52
      %v1771 = vpop.permute.xlu0 %1770
      %1774 = vrot.lane.b32.xlu0 %v1718, 56
      %v1775 = vpop.permute.xlu0 %1774
      %1778 = vrot.lane.b32.xlu0 %v1720, 60
      %v1779 = vpop.permute.xlu0 %1778
      %v1781 = vsel %vm415, %v1594, %v1723
      %v1782 = vsel %vm1058, %v1781, %v1727
      %v1783 = vsel %vm1060, %v1782, %v1731
      %v1784 = vsel %vm1062, %v1783, %v1735
      %v1785 = vsel %vm1064, %v1784, %v1739
      %v1786 = vsel %vm1066, %v1785, %v1743
      %v1787 = vsel %vm1068, %v1786, %v1747
      %v1788 = vsel %vm1070, %v1787, %v1751
      %v1789 = vsel %vm1072, %v1788, %v1755
      %v1790 = vsel %vm1074, %v1789, %v1759
      %v1791 = vsel %vm1076, %v1790, %v1763
      %v1792 = vsel %vm1078, %v1791, %v1767
      %v1793 = vsel %vm1080, %v1792, %v1771
      %v1794 = vsel %vm1082, %v1793, %v1775
      %v1795 = vsel %vm1084, %v1794, %v1779
      %1797 = vrot.lane.b32.xlu0 %v1085, 4
      %v1798 = vpop.permute.xlu0 %1797
      %v1800 = vsel %vm415, 0.0, %v1798
      %v1801 = vadd.f32 %v1448, %v1800
      %1803 = vrot.lane.b32.xlu0 %v1795, 124
      %v1804 = vpop.permute.xlu0 %1803
      %v1806 = vsel %vm1084, %v1804, 0.0
      %v1807 = vadd.f32 %v1801, %v1806
      %v1808 = vld [vmem:[%s4] sm:$0x1]
      %v1810 = vperm.slane %v1808, 0
      %v1812 = vadd.f32 %v1807, %v1810
      %vm1813 = vcmask 523264
      %1814 = vst.msk [vmem:[%s388] sm:$0xff] %vm1813, %v1812
      %p1815 = scmp.lt.s32.totalorder %s20, 1
      %s1816 = scalar_select %p1815, %s20, 1
      %p1817 = scmp.lt.s32.totalorder %s21, 1
      %s1818 = scalar_select %p1817, %s21, 1
      %s1819 = smul.addr %s1816, 2
      %s1820 = sadd.s32 %s1818, %s1819
      %s1821 = smul.addr %s1820, 8
      %s1822 = scalar_lea.vmem %s5, %s1821
      // Predicated region
      $region41: #{seqconv3x3_forward.1} parent=39 // pred_check
        %p1823 = pneg %p190
      $region42: #{seqconv3x3_forward.1} parent=39 // pred_check_branch
        %1825 = sbr.rel (%p1823) target = $region44
      $region43: #{seqconv3x3_forward.1} parent=39 // pred_region
        _
      $region44: #{seqconv3x3_forward.1} parent=39 // pred_fallthru
        _
    $region40: #{seqconv3x3_forward.1} parent=5 // pred_fallthru
      _
    %p1826 = scmp.le.s32.totalorder 2, %s11
    // Predicated region
    $region45: #{seqconv3x3_forward.1} parent=5 // pred_check
      %p1827 = pneg %p1826
    $region46: #{seqconv3x3_forward.1} parent=5 // pred_check_branch
      %1829 = sbr.rel (%p1827) target = $region48
    $region47: #{seqconv3x3_forward.1} parent=5 // pred_region
      %s1830 = ssub.s32 %s11, 2
      // Predicated region
      $region49: #{seqconv3x3_forward.1} parent=47 // pred_check
        %p1831 = pneg %p196
      $region50: #{seqconv3x3_forward.1} parent=47 // pred_check_branch
        %1833 = sbr.rel (%p1831) target = $region52
      $region51: #{seqconv3x3_forward.1} parent=47 // pred_region
        %p1834 = scmp.lt.s32.totalorder %s22, 1
        %s1835 = scalar_select %p1834, %s22, 1
        %p1836 = scmp.lt.s32.totalorder %s23, 1
        %s1837 = scalar_select %p1836, %s23, 1
        %s1838 = smul.addr %s1835, 2
        %s1839 = sadd.s32 %s1837, %s1838
        %s1840 = smul.addr %s1839, 8
        %s1841 = scalar_lea.vmem %s5, %s1840
      $region52: #{seqconv3x3_forward.1} parent=47 // pred_fallthru
        _
    $region48: #{seqconv3x3_forward.1} parent=5 // pred_fallthru
      _
  $region6: #{seqconv3x3_forward.1} parent=0 // loop_footer
    %s15 = sadd.s32 1, %s11
  $region7: #{seqconv3x3_forward.1} parent=0 // loop_footer_branch
    %10 = sbr.rel target = $region3
  $region8: #{seqconv3x3_forward.1} parent=0 // loop_exit
    _

</llo_original>
